<compile_context>
chip_gen: v7x
topology: tpu7x:2x2x1
jax: 0.10.0
libtpu: 0.0.40
codegen_flags: <defaults>
</compile_context>

<pallas_src>
import functools

import jax
import jax.numpy as jnp
import numpy as np
from jax.experimental import pallas as pl
from jax.experimental.pallas import tpu as pltpu


def transformer_encoder_kernel(x_blk_ref, x_full_ref, bias_ref, head_sel_ref,
                               gamma_ref, beta_ref,
                               wq_ref, bq_ref, wk_ref, bk_ref, wv_ref, bv_ref,
                               w_out_ref, b_out_ref, w1_ref, b1_ref,
                               w2_ref, b2_ref, o_ref, *, n_heads, mxu_dtype):
    f32 = jnp.float32
    eps = 1e-5
    H = n_heads

    x_blk = x_blk_ref[...].astype(f32)      # (TQ, E): this block's rows (queries/residual)
    x_all = x_full_ref[...].astype(f32)     # (NL, E): all rows (key/value source)
    TQ, E = x_blk.shape
    NL = x_all.shape[0]

    gamma = gamma_ref[...]                  # (1, E)
    beta = beta_ref[...]                    # (1, E)

    def layer_norm(v):                      # f32 VPU/EUP path (kept out of bf16)
        mu = jnp.mean(v, axis=-1, keepdims=True)
        c = v - mu
        var = jnp.mean(c * c, axis=-1, keepdims=True)
        return c * jax.lax.rsqrt(var + eps) * gamma + beta

    def mm(a, w_ref, b_ref):                # bf16 MXU operands, f32 accumulate
        return jnp.dot(a.astype(mxu_dtype), w_ref[...],
                       preferred_element_type=f32) + b_ref[...]

    # ---- self-attention branch ----
    xq = layer_norm(x_blk)                  # queries: this row block only
    xkv = layer_norm(x_all)                 # keys/values: all rows (recomputed per
                                            # block; two tiny MXU pushes)
    q = mm(xq, wq_ref, bq_ref)              # (TQ, E)   1/sqrt(dh) folded into wq/bq
    k = mm(xkv, wk_ref, bk_ref)             # (NL, E)
    v = mm(xkv, wv_ref, bv_ref)             # (NL, E)

    # Head-masked query slab, rows ordered (h, i): row h*TQ+i holds q[i] with all
    # columns outside head h zeroed.  K and V stay unreplicated / unmasked.
    head_sel = head_sel_ref[...]            # (H, E) in {0, 1}
    q_slab = (q[None, :, :] * head_sel[:, None, :]).reshape(H * TQ, E)

    # scores[(h,i), r] = sum_{e in head h} q[i,e] * k[r,e]  -- one 2-D MXU dot.
    s = jax.lax.dot_general(q_slab.astype(mxu_dtype), k.astype(mxu_dtype),
                            dimension_numbers=(((1,), (1,)), ((), ())),
                            preferred_element_type=f32)             # (H*TQ, NL)

    # Cross-batch key columns get -1e30 (host-precomputed additive bias); the
    # per-(head, query-row) max and denominator are plain last-axis f32 reductions.
    s3 = s.reshape(H, TQ, NL) + bias_ref[...][None]                 # (H, TQ, NL)
    s3 = s3 - jnp.max(s3, axis=-1, keepdims=True)
    p3 = jnp.exp(s3)
    l3 = jnp.sum(p3, axis=-1, keepdims=True)                        # (H, TQ, 1)

    pv = jnp.dot(p3.reshape(H * TQ, NL).astype(mxu_dtype),
                 v.astype(mxu_dtype),
                 preferred_element_type=f32)                        # (H*TQ, E)
    o3 = pv.reshape(H, TQ, E) * pl.reciprocal(l3, approx=True)
    # Each output column e is taken from its own head's slab row (others are
    # masked out) and summed over the small leading head axis.
    ctx = jnp.sum(o3 * head_sel[:, None, :], axis=0)                # (TQ, E)

    attn = mm(ctx, w_out_ref, b_out_ref)
    _x = x_blk + attn                                               # residual (f32)

    # ---- MLP branch (Dropout p=0 -> identity) ----
    x2 = layer_norm(_x)
    h1 = jnp.maximum(mm(x2, w1_ref, b1_ref), 0.0)
    h2 = jnp.maximum(mm(h1, w2_ref, b2_ref), 0.0)

    o_ref[...] = (_x + h2).astype(o_ref.dtype)


def prepare_params(params, n_heads, seq_len, batch, mxu_dtype=jnp.bfloat16):
    """One-time host-side prep (hoisted out of the per-call path).

    * splits / transposes weights into (in, out) matmul layout,
    * folds the 1/sqrt(dh) query scale into w_q / b_q,
    * casts MXU weight operands to bf16 (biases / LN params stay f32),
    * builds the static head-selector and cross-batch score-bias constants.
    """
    E = params["gamma"].shape[-1]
    dh = E // n_heads
    q_scale = 1.0 / np.sqrt(dh)

    w_in = params["w_in"]                        # (3E, E) torch (out, in) layout
    b_in = params["b_in"].reshape(3 * E)
    wd = mxu_dtype
    f32 = jnp.float32

    NL = seq_len * batch
    row_batch = jnp.arange(NL) % batch           # rows ordered (l, n) -> batch = r % N
    attn_bias = jnp.where(row_batch[:, None] == row_batch[None, :],
                          jnp.float32(0.0), jnp.float32(-1e30))     # (NL, NL)

    return {
        "gamma": params["gamma"].astype(f32),
        "beta": params["beta"].astype(f32),
        "wq": (w_in[:E] * q_scale).T.astype(wd),               # (E, E), pre-scaled
        "bq": (b_in[:E] * q_scale).reshape(1, E).astype(f32),
        "wk": w_in[E:2 * E].T.astype(wd),                      # (E, E)
        "bk": b_in[E:2 * E].reshape(1, E).astype(f32),
        "wv": w_in[2 * E:].T.astype(wd),                       # (E, E)
        "bv": b_in[2 * E:].reshape(1, E).astype(f32),
        "w_out": params["w_out"].T.astype(wd),                 # (E, E)
        "b_out": params["b_out"].astype(f32),
        "w1": params["w1"].T.astype(wd),                       # (E, 4E)
        "b1": params["b1"].astype(f32),
        "w2": params["w2"].T.astype(wd),                       # (4E, E)
        "b2": params["b2"].astype(f32),
        # (H, E) head selector: column e belongs to head e // dh.
        "head_sel": (jnp.arange(E)[None, :] // dh
                     == jnp.arange(n_heads)[:, None]).astype(f32),
        # (NL, NL) additive score bias: 0 for same-batch pairs, -1e30 otherwise.
        "attn_bias": attn_bias,
    }


def transformer_encoder(x_lne, prep, n_heads, *, block_rows=8):
    """x_lne: (L, N, E) as in the PyTorch module (batch_first=False)."""
    L, N, E = x_lne.shape
    NL = L * N
    # Rows stay in their natural (l, n) order -> free reshape, no host transpose.
    x_flat = x_lne.reshape(NL, E)

    TQ = min(block_rows, NL)
    assert NL % TQ == 0 and TQ % 8 == 0, "row block must be a multiple of 8"
    grid = (NL // TQ,)

    const_args = [prep["head_sel"], prep["gamma"], prep["beta"],
                  prep["wq"], prep["bq"], prep["wk"], prep["bk"],
                  prep["wv"], prep["bv"], prep["w_out"], prep["b_out"],
                  prep["w1"], prep["b1"], prep["w2"], prep["b2"]]

    def const_spec(a):          # full block, constant index map -> VMEM-resident
        nd = a.ndim
        return pl.BlockSpec(a.shape, lambda i, _nd=nd: (0,) * _nd)

    out_flat = pl.pallas_call(
        functools.partial(transformer_encoder_kernel,
                          n_heads=n_heads, mxu_dtype=prep["wq"].dtype),
        out_shape=jax.ShapeDtypeStruct((NL, E), x_lne.dtype),
        grid_spec=pltpu.PrefetchScalarGridSpec(
            num_scalar_prefetch=0,
            grid=grid,
            in_specs=[
                pl.BlockSpec((TQ, E), lambda i: (i, 0)),    # this block's rows
                pl.BlockSpec((NL, E), lambda i: (0, 0)),    # full x for K/V (resident)
                pl.BlockSpec((TQ, NL), lambda i: (i, 0)),   # cross-batch score bias rows
            ] + [const_spec(a) for a in const_args],
            out_specs=pl.BlockSpec((TQ, E), lambda i: (i, 0)),
        ),
        # "parallel": row blocks shard across the 2 TensorCores on v7x; on
        # v5e/v6e (1 TC) they simply run back-to-back with weights loaded once.
        compiler_params=pltpu.CompilerParams(dimension_semantics=("parallel",)),
    )(x_flat, x_flat, prep["attn_bias"], *const_args)
    return out_flat.reshape(L, N, E)


def reference(x, p, n_heads):
    """Pure-JAX f32 reference of the intended PyTorch forward (eval mode)."""
    L, N, E = x.shape
    dh = E // n_heads

    def ln(v):
        mu = v.mean(-1, keepdims=True)
        var = ((v - mu) ** 2).mean(-1, keepdims=True)
        return (v - mu) / jnp.sqrt(var + 1e-5) * p["gamma"][0] + p["beta"][0]

    x1 = ln(x)
    qkv = x1 @ p["w_in"].T + p["b_in"][0]
    q, k, v = qkv[..., :E], qkv[..., E:2 * E], qkv[..., 2 * E:]
    q = q.reshape(L, N, n_heads, dh) / jnp.sqrt(dh)
    k = k.reshape(L, N, n_heads, dh)
    v = v.reshape(L, N, n_heads, dh)
    s = jnp.einsum('lnhd,mnhd->nhlm', q, k)
    pw = jax.nn.softmax(s, axis=-1)
    o = jnp.einsum('nhlm,mnhd->lnhd', pw, v).reshape(L, N, E)
    attn = o @ p["w_out"].T + p["b_out"][0]
    _x = x + attn
    x2 = ln(_x)
    h1 = jax.nn.relu(x2 @ p["w1"].T + p["b1"][0])
    h2 = jax.nn.relu(h1 @ p["w2"].T + p["b2"][0])
    return _x + h2


if __name__ == "__main__":
    dim, n_heads, L, N = 32, 4, 8, 2

    key = jax.random.PRNGKey(0)
    ks = jax.random.split(key, 12)
    s = 0.1
    params = {
        "gamma": 1.0 + s * jax.random.normal(ks[1], (1, dim), jnp.float32),
        "beta":  s * jax.random.normal(ks[2], (1, dim), jnp.float32),
        "w_in":  s * jax.random.normal(ks[3], (3 * dim, dim), jnp.float32),
        "b_in":  s * jax.random.normal(ks[4], (1, 3 * dim), jnp.float32),
        "w_out": s * jax.random.normal(ks[5], (dim, dim), jnp.float32),
        "b_out": s * jax.random.normal(ks[6], (1, dim), jnp.float32),
        "w1":    s * jax.random.normal(ks[7], (4 * dim, dim), jnp.float32),
        "b1":    s * jax.random.normal(ks[8], (1, 4 * dim), jnp.float32),
        "w2":    s * jax.random.normal(ks[9], (dim, 4 * dim), jnp.float32),
        "b2":    s * jax.random.normal(ks[10], (1, dim), jnp.float32),
    }
    x = jax.random.normal(ks[0], (L, N, dim), jnp.float32)   # (seq, batch, dim)

    # One-time host-side weight/mask prep (per review: not in the per-call path).
    prep = prepare_params(params, n_heads, seq_len=L, batch=N)

    out = transformer_encoder(x, prep, n_heads)
    out = jax.block_until_ready(out)

    ref = reference(x, params, n_heads)
    # Kernel uses bf16 MXU operands with f32 accumulation (v6e/v7x review item)
    # plus the approximate EUP reciprocal in the softmax, so agreement with the
    # exact-f32 reference is operand-rounding bound; tolerance set accordingly
    # (passing mxu_dtype=jnp.float32 to prepare_params restores <=1e-3 agreement).
    np.testing.assert_allclose(np.asarray(out), np.asarray(ref),
                               rtol=2e-2, atol=2e-2)
    print("KERNEL_OK")
</pallas_src>

<mosaic_0001>
module attributes {stable_mosaic.version = 11 : i64} {
  func.func @transformer_encoder_kernel(%arg0: i32, %arg1: memref<8x32xf32, #tpu.memory_space<vmem>>, %arg2: memref<16x32xf32, #tpu.memory_space<vmem>>, %arg3: memref<8x16xf32, #tpu.memory_space<vmem>>, %arg4: memref<4x32xf32, #tpu.memory_space<vmem>>, %arg5: memref<1x32xf32, #tpu.memory_space<vmem>>, %arg6: memref<1x32xf32, #tpu.memory_space<vmem>>, %arg7: memref<32x32xbf16, #tpu.memory_space<vmem>>, %arg8: memref<1x32xf32, #tpu.memory_space<vmem>>, %arg9: memref<32x32xbf16, #tpu.memory_space<vmem>>, %arg10: memref<1x32xf32, #tpu.memory_space<vmem>>, %arg11: memref<32x32xbf16, #tpu.memory_space<vmem>>, %arg12: memref<1x32xf32, #tpu.memory_space<vmem>>, %arg13: memref<32x32xbf16, #tpu.memory_space<vmem>>, %arg14: memref<1x32xf32, #tpu.memory_space<vmem>>, %arg15: memref<32x128xbf16, #tpu.memory_space<vmem>>, %arg16: memref<1x128xf32, #tpu.memory_space<vmem>>, %arg17: memref<128x32xbf16, #tpu.memory_space<vmem>>, %arg18: memref<1x32xf32, #tpu.memory_space<vmem>>, %arg19: memref<8x32xf32, #tpu.memory_space<vmem>>) attributes {dimension_semantics = [#tpu.dimension_semantics<parallel>], iteration_bounds = array<i64: 2>, scalar_prefetch = 0 : i64, scratch_operands = 0 : i64, tpu.core_type = #tpu.core_type<tc>, window_params = [{transform_indices = @transform_0, window_bounds = array<i64: 8, 32>}, {pipeline_mode = #tpu.pipeline_mode<synchronous>, transform_indices = @transform_1, window_bounds = array<i64: 16, 32>}, {transform_indices = @transform_2, window_bounds = array<i64: 8, 16>}, {pipeline_mode = #tpu.pipeline_mode<synchronous>, transform_indices = @transform_3, window_bounds = array<i64: 4, 32>}, {pipeline_mode = #tpu.pipeline_mode<synchronous>, transform_indices = @transform_4, window_bounds = array<i64: 1, 32>}, {pipeline_mode = #tpu.pipeline_mode<synchronous>, transform_indices = @transform_5, window_bounds = array<i64: 1, 32>}, {pipeline_mode = #tpu.pipeline_mode<synchronous>, transform_indices = @transform_6, window_bounds = array<i64: 32, 32>}, {pipeline_mode = #tpu.pipeline_mode<synchronous>, transform_indices = @transform_7, window_bounds = array<i64: 1, 32>}, {pipeline_mode = #tpu.pipeline_mode<synchronous>, transform_indices = @transform_8, window_bounds = array<i64: 32, 32>}, {pipeline_mode = #tpu.pipeline_mode<synchronous>, transform_indices = @transform_9, window_bounds = array<i64: 1, 32>}, {pipeline_mode = #tpu.pipeline_mode<synchronous>, transform_indices = @transform_10, window_bounds = array<i64: 32, 32>}, {pipeline_mode = #tpu.pipeline_mode<synchronous>, transform_indices = @transform_11, window_bounds = array<i64: 1, 32>}, {pipeline_mode = #tpu.pipeline_mode<synchronous>, transform_indices = @transform_12, window_bounds = array<i64: 32, 32>}, {pipeline_mode = #tpu.pipeline_mode<synchronous>, transform_indices = @transform_13, window_bounds = array<i64: 1, 32>}, {pipeline_mode = #tpu.pipeline_mode<synchronous>, transform_indices = @transform_14, window_bounds = array<i64: 32, 128>}, {pipeline_mode = #tpu.pipeline_mode<synchronous>, transform_indices = @transform_15, window_bounds = array<i64: 1, 128>}, {pipeline_mode = #tpu.pipeline_mode<synchronous>, transform_indices = @transform_16, window_bounds = array<i64: 128, 32>}, {pipeline_mode = #tpu.pipeline_mode<synchronous>, transform_indices = @transform_17, window_bounds = array<i64: 1, 32>}, {transform_indices = @transform_18, window_bounds = array<i64: 8, 32>}]} {
    %c0 = arith.constant 0 : index
    %c0_0 = arith.constant 0 : index
    %0 = vector.load %arg1[%c0, %c0_0] : memref<8x32xf32, #tpu.memory_space<vmem>>, vector<8x32xf32>
    %c0_1 = arith.constant 0 : index
    %c0_2 = arith.constant 0 : index
    %1 = vector.load %arg2[%c0_1, %c0_2] : memref<16x32xf32, #tpu.memory_space<vmem>>, vector<16x32xf32>
    %c0_3 = arith.constant 0 : index
    %c0_4 = arith.constant 0 : index
    %2 = vector.load %arg5[%c0_3, %c0_4] : memref<1x32xf32, #tpu.memory_space<vmem>>, vector<1x32xf32>
    %c0_5 = arith.constant 0 : index
    %c0_6 = arith.constant 0 : index
    %3 = vector.load %arg6[%c0_5, %c0_6] : memref<1x32xf32, #tpu.memory_space<vmem>>, vector<1x32xf32>
    %cst = arith.constant dense<0.000000e+00> : vector<8xf32>
    %4 = vector.multi_reduction <add>, %0, %cst [1] : vector<8x32xf32> to vector<8xf32>
    %5 = vector.shape_cast %4 : vector<8xf32> to vector<8x1xf32>
    %cst_7 = arith.constant 3.200000e+01 : f32
    %6 = vector.broadcast %cst_7 : f32 to vector<8x1xf32>
    %7 = arith.divf %5, %6 : vector<8x1xf32>
    %8 = vector.broadcast %7 : vector<8x1xf32> to vector<8x32xf32>
    %9 = arith.subf %0, %8 : vector<8x32xf32>
    %10 = arith.mulf %9, %9 : vector<8x32xf32>
    %cst_8 = arith.constant dense<0.000000e+00> : vector<8xf32>
    %11 = vector.multi_reduction <add>, %10, %cst_8 [1] : vector<8x32xf32> to vector<8xf32>
    %12 = vector.shape_cast %11 : vector<8xf32> to vector<8x1xf32>
    %cst_9 = arith.constant 3.200000e+01 : f32
    %13 = vector.broadcast %cst_9 : f32 to vector<8x1xf32>
    %14 = arith.divf %12, %13 : vector<8x1xf32>
    %cst_10 = arith.constant 9.99999974E-6 : f32
    %15 = vector.broadcast %cst_10 : f32 to vector<8x1xf32>
    %16 = arith.addf %14, %15 : vector<8x1xf32>
    %17 = math.rsqrt %16 : vector<8x1xf32>
    %18 = vector.broadcast %17 : vector<8x1xf32> to vector<8x32xf32>
    %19 = arith.mulf %9, %18 : vector<8x32xf32>
    %20 = vector.broadcast %2 : vector<1x32xf32> to vector<8x32xf32>
    %21 = arith.mulf %19, %20 : vector<8x32xf32>
    %22 = vector.broadcast %3 : vector<1x32xf32> to vector<8x32xf32>
    %23 = arith.addf %21, %22 : vector<8x32xf32>
    %cst_11 = arith.constant dense<0.000000e+00> : vector<16xf32>
    %24 = vector.multi_reduction <add>, %1, %cst_11 [1] : vector<16x32xf32> to vector<16xf32>
    %25 = vector.shape_cast %24 : vector<16xf32> to vector<16x1xf32>
    %cst_12 = arith.constant 3.200000e+01 : f32
    %26 = vector.broadcast %cst_12 : f32 to vector<16x1xf32>
    %27 = arith.divf %25, %26 : vector<16x1xf32>
    %28 = vector.broadcast %27 : vector<16x1xf32> to vector<16x32xf32>
    %29 = arith.subf %1, %28 : vector<16x32xf32>
    %30 = arith.mulf %29, %29 : vector<16x32xf32>
    %cst_13 = arith.constant dense<0.000000e+00> : vector<16xf32>
    %31 = vector.multi_reduction <add>, %30, %cst_13 [1] : vector<16x32xf32> to vector<16xf32>
    %32 = vector.shape_cast %31 : vector<16xf32> to vector<16x1xf32>
    %cst_14 = arith.constant 3.200000e+01 : f32
    %33 = vector.broadcast %cst_14 : f32 to vector<16x1xf32>
    %34 = arith.divf %32, %33 : vector<16x1xf32>
    %cst_15 = arith.constant 9.99999974E-6 : f32
    %35 = vector.broadcast %cst_15 : f32 to vector<16x1xf32>
    %36 = arith.addf %34, %35 : vector<16x1xf32>
    %37 = math.rsqrt %36 : vector<16x1xf32>
    %38 = vector.broadcast %37 : vector<16x1xf32> to vector<16x32xf32>
    %39 = arith.mulf %29, %38 : vector<16x32xf32>
    %40 = vector.broadcast %2 : vector<1x32xf32> to vector<16x32xf32>
    %41 = arith.mulf %39, %40 : vector<16x32xf32>
    %42 = vector.broadcast %3 : vector<1x32xf32> to vector<16x32xf32>
    %43 = arith.addf %41, %42 : vector<16x32xf32>
    %44 = arith.truncf %23 : vector<8x32xf32> to vector<8x32xbf16>
    %c0_16 = arith.constant 0 : index
    %c0_17 = arith.constant 0 : index
    %45 = vector.load %arg7[%c0_16, %c0_17] : memref<32x32xbf16, #tpu.memory_space<vmem>>, vector<32x32xbf16>
    %cst_18 = arith.constant dense<0.000000e+00> : vector<8x32xf32>
    %46 = tpu.matmul %44, %45, %cst_18 {dimension_numbers = #tpu.dot_dimension_numbers<[1], [0], [0], [1], [0, 0, 1, 1], [], []>} : vector<8x32xbf16>, vector<32x32xbf16>, vector<8x32xf32> -> vector<8x32xf32>
    %c0_19 = arith.constant 0 : index
    %c0_20 = arith.constant 0 : index
    %47 = vector.load %arg8[%c0_19, %c0_20] : memref<1x32xf32, #tpu.memory_space<vmem>>, vector<1x32xf32>
    %48 = vector.broadcast %47 : vector<1x32xf32> to vector<8x32xf32>
    %49 = arith.addf %46, %48 : vector<8x32xf32>
    %50 = arith.truncf %43 : vector<16x32xf32> to vector<16x32xbf16>
    %c0_21 = arith.constant 0 : index
    %c0_22 = arith.constant 0 : index
    %51 = vector.load %arg9[%c0_21, %c0_22] : memref<32x32xbf16, #tpu.memory_space<vmem>>, vector<32x32xbf16>
    %cst_23 = arith.constant dense<0.000000e+00> : vector<16x32xf32>
    %52 = tpu.matmul %50, %51, %cst_23 {dimension_numbers = #tpu.dot_dimension_numbers<[1], [0], [0], [1], [0, 0, 1, 1], [], []>} : vector<16x32xbf16>, vector<32x32xbf16>, vector<16x32xf32> -> vector<16x32xf32>
    %c0_24 = arith.constant 0 : index
    %c0_25 = arith.constant 0 : index
    %53 = vector.load %arg10[%c0_24, %c0_25] : memref<1x32xf32, #tpu.memory_space<vmem>>, vector<1x32xf32>
    %54 = vector.broadcast %53 : vector<1x32xf32> to vector<16x32xf32>
    %55 = arith.addf %52, %54 : vector<16x32xf32>
    %56 = arith.truncf %43 : vector<16x32xf32> to vector<16x32xbf16>
    %c0_26 = arith.constant 0 : index
    %c0_27 = arith.constant 0 : index
    %57 = vector.load %arg11[%c0_26, %c0_27] : memref<32x32xbf16, #tpu.memory_space<vmem>>, vector<32x32xbf16>
    %cst_28 = arith.constant dense<0.000000e+00> : vector<16x32xf32>
    %58 = tpu.matmul %56, %57, %cst_28 {dimension_numbers = #tpu.dot_dimension_numbers<[1], [0], [0], [1], [0, 0, 1, 1], [], []>} : vector<16x32xbf16>, vector<32x32xbf16>, vector<16x32xf32> -> vector<16x32xf32>
    %c0_29 = arith.constant 0 : index
    %c0_30 = arith.constant 0 : index
    %59 = vector.load %arg12[%c0_29, %c0_30] : memref<1x32xf32, #tpu.memory_space<vmem>>, vector<1x32xf32>
    %60 = vector.broadcast %59 : vector<1x32xf32> to vector<16x32xf32>
    %61 = arith.addf %58, %60 : vector<16x32xf32>
    %c0_31 = arith.constant 0 : index
    %c0_32 = arith.constant 0 : index
    %62 = vector.load %arg4[%c0_31, %c0_32] : memref<4x32xf32, #tpu.memory_space<vmem>>, vector<4x32xf32>
    %63 = vector.shape_cast %49 : vector<8x32xf32> to vector<1x8x32xf32>
    %64 = vector.shape_cast %62 : vector<4x32xf32> to vector<4x1x32xf32>
    %65 = vector.broadcast %63 : vector<1x8x32xf32> to vector<4x8x32xf32>
    %66 = vector.broadcast %64 : vector<4x1x32xf32> to vector<4x8x32xf32>
    %67 = arith.mulf %65, %66 : vector<4x8x32xf32>
    %68 = vector.shape_cast %67 : vector<4x8x32xf32> to vector<32x32xf32>
    %69 = arith.truncf %68 : vector<32x32xf32> to vector<32x32xbf16>
    %70 = arith.truncf %55 : vector<16x32xf32> to vector<16x32xbf16>
    %cst_33 = arith.constant dense<0.000000e+00> : vector<32x16xf32>
    %71 = tpu.matmul %69, %70, %cst_33 {dimension_numbers = #tpu.dot_dimension_numbers<[1], [1], [0], [0], [0, 0, 1, 0], [], []>} : vector<32x32xbf16>, vector<16x32xbf16>, vector<32x16xf32> -> vector<32x16xf32>
    %72 = vector.shape_cast %71 : vector<32x16xf32> to vector<4x8x16xf32>
    %c0_34 = arith.constant 0 : index
    %c0_35 = arith.constant 0 : index
    %73 = vector.load %arg3[%c0_34, %c0_35] : memref<8x16xf32, #tpu.memory_space<vmem>>, vector<8x16xf32>
    %74 = vector.shape_cast %73 : vector<8x16xf32> to vector<1x8x16xf32>
    %75 = vector.broadcast %74 : vector<1x8x16xf32> to vector<4x8x16xf32>
    %76 = arith.addf %72, %75 : vector<4x8x16xf32>
    %cst_36 = arith.constant dense<0xFF800000> : vector<4x8xf32>
    %77 = vector.multi_reduction <maximumf>, %76, %cst_36 [2] : vector<4x8x16xf32> to vector<4x8xf32>
    %78 = vector.shape_cast %77 : vector<4x8xf32> to vector<4x8x1xf32>
    %79 = vector.broadcast %78 : vector<4x8x1xf32> to vector<4x8x16xf32>
    %80 = arith.subf %76, %79 : vector<4x8x16xf32>
    %81 = math.exp %80 : vector<4x8x16xf32>
    %cst_37 = arith.constant dense<0.000000e+00> : vector<4x8xf32>
    %82 = vector.multi_reduction <add>, %81, %cst_37 [2] : vector<4x8x16xf32> to vector<4x8xf32>
    %83 = vector.shape_cast %82 : vector<4x8xf32> to vector<4x8x1xf32>
    %84 = vector.shape_cast %81 : vector<4x8x16xf32> to vector<32x16xf32>
    %85 = arith.truncf %84 : vector<32x16xf32> to vector<32x16xbf16>
    %86 = arith.truncf %61 : vector<16x32xf32> to vector<16x32xbf16>
    %cst_38 = arith.constant dense<0.000000e+00> : vector<32x32xf32>
    %87 = tpu.matmul %85, %86, %cst_38 {dimension_numbers = #tpu.dot_dimension_numbers<[1], [0], [0], [1], [0, 0, 1, 1], [], []>} : vector<32x16xbf16>, vector<16x32xbf16>, vector<32x32xf32> -> vector<32x32xf32>
    %88 = vector.shape_cast %87 : vector<32x32xf32> to vector<4x8x32xf32>
    %89 = tpu.reciprocal %83 {approx = true} : vector<4x8x1xf32> -> vector<4x8x1xf32>
    %90 = vector.broadcast %89 : vector<4x8x1xf32> to vector<4x8x32xf32>
    %91 = arith.mulf %88, %90 : vector<4x8x32xf32>
    %92 = vector.shape_cast %62 : vector<4x32xf32> to vector<4x1x32xf32>
    %93 = vector.broadcast %92 : vector<4x1x32xf32> to vector<4x8x32xf32>
    %94 = arith.mulf %91, %93 : vector<4x8x32xf32>
    %cst_39 = arith.constant dense<0.000000e+00> : vector<8x32xf32>
    %95 = vector.multi_reduction <add>, %94, %cst_39 [0] : vector<4x8x32xf32> to vector<8x32xf32>
    %96 = arith.truncf %95 : vector<8x32xf32> to vector<8x32xbf16>
    %c0_40 = arith.constant 0 : index
    %c0_41 = arith.constant 0 : index
    %97 = vector.load %arg13[%c0_40, %c0_41] : memref<32x32xbf16, #tpu.memory_space<vmem>>, vector<32x32xbf16>
    %cst_42 = arith.constant dense<0.000000e+00> : vector<8x32xf32>
    %98 = tpu.matmul %96, %97, %cst_42 {dimension_numbers = #tpu.dot_dimension_numbers<[1], [0], [0], [1], [0, 0, 1, 1], [], []>} : vector<8x32xbf16>, vector<32x32xbf16>, vector<8x32xf32> -> vector<8x32xf32>
    %c0_43 = arith.constant 0 : index
    %c0_44 = arith.constant 0 : index
    %99 = vector.load %arg14[%c0_43, %c0_44] : memref<1x32xf32, #tpu.memory_space<vmem>>, vector<1x32xf32>
    %100 = vector.broadcast %99 : vector<1x32xf32> to vector<8x32xf32>
    %101 = arith.addf %98, %100 : vector<8x32xf32>
    %102 = arith.addf %0, %101 : vector<8x32xf32>
    %cst_45 = arith.constant dense<0.000000e+00> : vector<8xf32>
    %103 = vector.multi_reduction <add>, %102, %cst_45 [1] : vector<8x32xf32> to vector<8xf32>
    %104 = vector.shape_cast %103 : vector<8xf32> to vector<8x1xf32>
    %cst_46 = arith.constant 3.200000e+01 : f32
    %105 = vector.broadcast %cst_46 : f32 to vector<8x1xf32>
    %106 = arith.divf %104, %105 : vector<8x1xf32>
    %107 = vector.broadcast %106 : vector<8x1xf32> to vector<8x32xf32>
    %108 = arith.subf %102, %107 : vector<8x32xf32>
    %109 = arith.mulf %108, %108 : vector<8x32xf32>
    %cst_47 = arith.constant dense<0.000000e+00> : vector<8xf32>
    %110 = vector.multi_reduction <add>, %109, %cst_47 [1] : vector<8x32xf32> to vector<8xf32>
    %111 = vector.shape_cast %110 : vector<8xf32> to vector<8x1xf32>
    %cst_48 = arith.constant 3.200000e+01 : f32
    %112 = vector.broadcast %cst_48 : f32 to vector<8x1xf32>
    %113 = arith.divf %111, %112 : vector<8x1xf32>
    %cst_49 = arith.constant 9.99999974E-6 : f32
    %114 = vector.broadcast %cst_49 : f32 to vector<8x1xf32>
    %115 = arith.addf %113, %114 : vector<8x1xf32>
    %116 = math.rsqrt %115 : vector<8x1xf32>
    %117 = vector.broadcast %116 : vector<8x1xf32> to vector<8x32xf32>
    %118 = arith.mulf %108, %117 : vector<8x32xf32>
    %119 = vector.broadcast %2 : vector<1x32xf32> to vector<8x32xf32>
    %120 = arith.mulf %118, %119 : vector<8x32xf32>
    %121 = vector.broadcast %3 : vector<1x32xf32> to vector<8x32xf32>
    %122 = arith.addf %120, %121 : vector<8x32xf32>
    %123 = arith.truncf %122 : vector<8x32xf32> to vector<8x32xbf16>
    %c0_50 = arith.constant 0 : index
    %c0_51 = arith.constant 0 : index
    %124 = vector.load %arg15[%c0_50, %c0_51] : memref<32x128xbf16, #tpu.memory_space<vmem>>, vector<32x128xbf16>
    %cst_52 = arith.constant dense<0.000000e+00> : vector<8x128xf32>
    %125 = tpu.matmul %123, %124, %cst_52 {dimension_numbers = #tpu.dot_dimension_numbers<[1], [0], [0], [1], [0, 0, 1, 1], [], []>} : vector<8x32xbf16>, vector<32x128xbf16>, vector<8x128xf32> -> vector<8x128xf32>
    %c0_53 = arith.constant 0 : index
    %c0_54 = arith.constant 0 : index
    %126 = vector.load %arg16[%c0_53, %c0_54] : memref<1x128xf32, #tpu.memory_space<vmem>>, vector<1x128xf32>
    %127 = vector.broadcast %126 : vector<1x128xf32> to vector<8x128xf32>
    %128 = arith.addf %125, %127 : vector<8x128xf32>
    %cst_55 = arith.constant 0.000000e+00 : f32
    %129 = vector.broadcast %cst_55 : f32 to vector<8x128xf32>
    %130 = arith.maximumf %128, %129 : vector<8x128xf32>
    %131 = arith.truncf %130 : vector<8x128xf32> to vector<8x128xbf16>
    %c0_56 = arith.constant 0 : index
    %c0_57 = arith.constant 0 : index
    %132 = vector.load %arg17[%c0_56, %c0_57] : memref<128x32xbf16, #tpu.memory_space<vmem>>, vector<128x32xbf16>
    %cst_58 = arith.constant dense<0.000000e+00> : vector<8x32xf32>
    %133 = tpu.matmul %131, %132, %cst_58 {dimension_numbers = #tpu.dot_dimension_numbers<[1], [0], [0], [1], [0, 0, 1, 1], [], []>} : vector<8x128xbf16>, vector<128x32xbf16>, vector<8x32xf32> -> vector<8x32xf32>
    %c0_59 = arith.constant 0 : index
    %c0_60 = arith.constant 0 : index
    %134 = vector.load %arg18[%c0_59, %c0_60] : memref<1x32xf32, #tpu.memory_space<vmem>>, vector<1x32xf32>
    %135 = vector.broadcast %134 : vector<1x32xf32> to vector<8x32xf32>
    %136 = arith.addf %133, %135 : vector<8x32xf32>
    %cst_61 = arith.constant 0.000000e+00 : f32
    %137 = vector.broadcast %cst_61 : f32 to vector<8x32xf32>
    %138 = arith.maximumf %136, %137 : vector<8x32xf32>
    %139 = arith.addf %102, %138 : vector<8x32xf32>
    %c0_62 = arith.constant 0 : index
    %c0_63 = arith.constant 0 : index
    %140 = vector.load %arg19[%c0_62, %c0_63] : memref<8x32xf32, #tpu.memory_space<vmem>>, vector<8x32xf32>
    tpu.vector_store %arg19[%c0_62, %c0_63], %139 {strides = array<i32>} : memref<8x32xf32, #tpu.memory_space<vmem>>, vector<8x32xf32>,
    return
  }
  func.func @transform_0(%arg0: i32) -> (i32, i32) {
    %c0_i32 = arith.constant 0 : i32
    %c0_i32_0 = arith.constant 0 : i32
    return %arg0, %c0_i32 : i32, i32
  }
  func.func @transform_1(%arg0: i32) -> (i32, i32) {
    %c0_i32 = arith.constant 0 : i32
    %c0_i32_0 = arith.constant 0 : i32
    %c0_i32_1 = arith.constant 0 : i32
    return %c0_i32, %c0_i32_0 : i32, i32
  }
  func.func @transform_2(%arg0: i32) -> (i32, i32) {
    %c0_i32 = arith.constant 0 : i32
    %c0_i32_0 = arith.constant 0 : i32
    return %arg0, %c0_i32 : i32, i32
  }
  func.func @transform_3(%arg0: i32) -> (i32, i32) {
    %c0_i32 = arith.constant 0 : i32
    %c0_i32_0 = arith.constant 0 : i32
    %c0_i32_1 = arith.constant 0 : i32
    return %c0_i32, %c0_i32_0 : i32, i32
  }
  func.func @transform_4(%arg0: i32) -> (i32, i32) {
    %c0_i32 = arith.constant 0 : i32
    %c0_i32_0 = arith.constant 0 : i32
    %c0_i32_1 = arith.constant 0 : i32
    return %c0_i32, %c0_i32_0 : i32, i32
  }
  func.func @transform_5(%arg0: i32) -> (i32, i32) {
    %c0_i32 = arith.constant 0 : i32
    %c0_i32_0 = arith.constant 0 : i32
    %c0_i32_1 = arith.constant 0 : i32
    return %c0_i32, %c0_i32_0 : i32, i32
  }
  func.func @transform_6(%arg0: i32) -> (i32, i32) {
    %c0_i32 = arith.constant 0 : i32
    %c0_i32_0 = arith.constant 0 : i32
    %c0_i32_1 = arith.constant 0 : i32
    return %c0_i32, %c0_i32_0 : i32, i32
  }
  func.func @transform_7(%arg0: i32) -> (i32, i32) {
    %c0_i32 = arith.constant 0 : i32
    %c0_i32_0 = arith.constant 0 : i32
    %c0_i32_1 = arith.constant 0 : i32
    return %c0_i32, %c0_i32_0 : i32, i32
  }
  func.func @transform_8(%arg0: i32) -> (i32, i32) {
    %c0_i32 = arith.constant 0 : i32
    %c0_i32_0 = arith.constant 0 : i32
    %c0_i32_1 = arith.constant 0 : i32
    return %c0_i32, %c0_i32_0 : i32, i32
  }
  func.func @transform_9(%arg0: i32) -> (i32, i32) {
    %c0_i32 = arith.constant 0 : i32
    %c0_i32_0 = arith.constant 0 : i32
    %c0_i32_1 = arith.constant 0 : i32
    return %c0_i32, %c0_i32_0 : i32, i32
  }
  func.func @transform_10(%arg0: i32) -> (i32, i32) {
    %c0_i32 = arith.constant 0 : i32
    %c0_i32_0 = arith.constant 0 : i32
    %c0_i32_1 = arith.constant 0 : i32
    return %c0_i32, %c0_i32_0 : i32, i32
  }
  func.func @transform_11(%arg0: i32) -> (i32, i32) {
    %c0_i32 = arith.constant 0 : i32
    %c0_i32_0 = arith.constant 0 : i32
    %c0_i32_1 = arith.constant 0 : i32
    return %c0_i32, %c0_i32_0 : i32, i32
  }
  func.func @transform_12(%arg0: i32) -> (i32, i32) {
    %c0_i32 = arith.constant 0 : i32
    %c0_i32_0 = arith.constant 0 : i32
    %c0_i32_1 = arith.constant 0 : i32
    return %c0_i32, %c0_i32_0 : i32, i32
  }
  func.func @transform_13(%arg0: i32) -> (i32, i32) {
    %c0_i32 = arith.constant 0 : i32
    %c0_i32_0 = arith.constant 0 : i32
    %c0_i32_1 = arith.constant 0 : i32
    return %c0_i32, %c0_i32_0 : i32, i32
  }
  func.func @transform_14(%arg0: i32) -> (i32, i32) {
    %c0_i32 = arith.constant 0 : i32
    %c0_i32_0 = arith.constant 0 : i32
    %c0_i32_1 = arith.constant 0 : i32
    return %c0_i32, %c0_i32_0 : i32, i32
  }
  func.func @transform_15(%arg0: i32) -> (i32, i32) {
    %c0_i32 = arith.constant 0 : i32
    %c0_i32_0 = arith.constant 0 : i32
    %c0_i32_1 = arith.constant 0 : i32
    return %c0_i32, %c0_i32_0 : i32, i32
  }
  func.func @transform_16(%arg0: i32) -> (i32, i32) {
    %c0_i32 = arith.constant 0 : i32
    %c0_i32_0 = arith.constant 0 : i32
    %c0_i32_1 = arith.constant 0 : i32
    return %c0_i32, %c0_i32_0 : i32, i32
  }
  func.func @transform_17(%arg0: i32) -> (i32, i32) {
    %c0_i32 = arith.constant 0 : i32
    %c0_i32_0 = arith.constant 0 : i32
    %c0_i32_1 = arith.constant 0 : i32
    return %c0_i32, %c0_i32_0 : i32, i32
  }
  func.func @transform_18(%arg0: i32) -> (i32, i32) {
    %c0_i32 = arith.constant 0 : i32
    %c0_i32_0 = arith.constant 0 : i32
    return %arg0, %c0_i32 : i32, i32
  }
}

</mosaic_0001>

<llo_original>
// kernel: tpu_custom_call.1
$region0: #{tpu_custom_call.1}
  #allocation0 [shape = 'u32[]', space=smem, size = 0x4, offset = 0x4, fixed_abs, tag = 'smem constant byte address 0x4 - core index']
  #allocation1 [shape = 'u32[144,128]{1,0:T(1,128)}', space=vmem, size = 0x12000, scoped, tag = 'internal scratch']
  %s0 = inlined_call_operand.vmem [shape: f32[16,32], index: 0, kind: input, shape index: {}]
  %s1 = inlined_call_operand.vmem [shape: f32[16,32], index: 1, kind: input, shape index: {}]
  %s2 = inlined_call_operand.vmem [shape: f32[16,16], index: 2, kind: input, shape index: {}]
  %s3 = inlined_call_operand.hbm [shape: f32[4,32], index: 3, kind: input, shape index: {}]
  %s4 = inlined_call_operand.vmem [shape: f32[1,32], index: 4, kind: input, shape index: {}]
  %s5 = inlined_call_operand.hbm [shape: f32[1,32], index: 5, kind: input, shape index: {}]
  %s6 = inlined_call_operand.vmem [shape: bf16[32,32], index: 6, kind: input, shape index: {}]
  %s7 = inlined_call_operand.hbm [shape: f32[1,32], index: 7, kind: input, shape index: {}]
  %s8 = inlined_call_operand.vmem [shape: bf16[32,32], index: 8, kind: input, shape index: {}]
  %s9 = inlined_call_operand.hbm [shape: f32[1,32], index: 9, kind: input, shape index: {}]
  %s10 = inlined_call_operand.vmem [shape: bf16[32,32], index: 10, kind: input, shape index: {}]
  %s11 = inlined_call_operand.hbm [shape: f32[1,32], index: 11, kind: input, shape index: {}]
  %s12 = inlined_call_operand.hbm [shape: bf16[32,32], index: 12, kind: input, shape index: {}]
  %s13 = inlined_call_operand.hbm [shape: f32[1,32], index: 13, kind: input, shape index: {}]
  %s14 = inlined_call_operand.vmem [shape: bf16[32,128], index: 14, kind: input, shape index: {}]
  %s15 = inlined_call_operand.vmem [shape: f32[1,128], index: 15, kind: input, shape index: {}]
  %s16 = inlined_call_operand.vmem [shape: bf16[128,32], index: 16, kind: input, shape index: {}]
  %s17 = inlined_call_operand.vmem [shape: f32[1,32], index: 17, kind: input, shape index: {}]
  %s18 = inlined_call_operand.hbm [shape: f32[16,32], index: 18, kind: output, shape index: {}]
  %s19 = sld [smem:[#allocation0]]
  $region133: #{tpu_custom_call.1} parent=0
    _
  %s21 = ssub.s32 1, %s19
  %s22 = scalar_select 0, %s21, %s19
  $region1: #{tpu_custom_call.1} parent=0
    #allocation2 [shape = 'u8[2048]{0}', space=vmem, size = 0x800, scoped, tag = 'input window, operand 3, single buffered']
    #allocation3 [shape = 's32[2]{0}', space=sflag, size = 0x8, scoped, tag = 'scoped memory for tpu_custom_call.1']
    #allocation4 [shape = 's32[2]{0}', space=sflag, size = 0x8, scoped, tag = 'scoped memory for tpu_custom_call.1']
    #allocation5 [shape = 'u8[512]{0}', space=vmem, size = 0x400, scoped, tag = 'input window, operand 5, single buffered']
    #allocation6 [shape = 's32[1]{0}', space=sflag, size = 0x4, scoped, tag = 'scoped memory for tpu_custom_call.1']
    #allocation7 [shape = 'u8[512]{0}', space=vmem, size = 0x400, scoped, tag = 'input window, operand 7, single buffered']
    #allocation8 [shape = 'u8[512]{0}', space=vmem, size = 0x400, scoped, tag = 'input window, operand 9, single buffered']
    #allocation9 [shape = 's32[1]{0}', space=sflag, size = 0x4, scoped, tag = 'scoped memory for tpu_custom_call.1']
    #allocation10 [shape = 'u8[512]{0}', space=vmem, size = 0x400, scoped, tag = 'input window, operand 11, single buffered']
    #allocation11 [shape = 'u8[8192]{0}', space=vmem, size = 0x2000, scoped, tag = 'input window, operand 12, single buffered']
    #allocation12 [shape = 's32[1]{0}', space=sflag, size = 0x4, scoped, tag = 'scoped memory for tpu_custom_call.1']
    #allocation13 [shape = 'u8[512]{0}', space=vmem, size = 0x400, scoped, tag = 'input window, operand 13, single buffered']
    #allocation14 [shape = 'u8[8192]{0}', space=vmem, size = 0x2000, scoped, tag = 'output window, operand 0']
    %23 = vsyncpa [#allocation3], 0
    %24 = vsyncpa [#allocation6], 0
    %25 = vsyncpa [#allocation9], 0
    %26 = vsyncpa [#allocation12], 0
    %27 = vsyncpa [#allocation4], 0
    %s28 = scalar_lea.sflag [#allocation4], 1
    %29 = vsyncpa %s28, 0
    loop: start=0, step=1, limit=4
    $region2: #{tpu_custom_call.1} parent=1 // loop_pre_header
      _
    $region3: #{tpu_custom_call.1} parent=1 // loop_header
      %s31 = sphi 0, %s35
      %p32 = scmp.ge.s32.totalorder %s31, 4
      %s41 = sphi 0, %s43
      %s44 = sphi 0, %s41
      %s45 = sphi 0, %s44
      %s61 = sphi 0, %s45
      %s65 = sphi 0, %s65
      %s67 = sphi 0, %s65
      %s68 = sphi 0, %s67
      %s82 = sphi 0, %s68
      %s88 = sphi 0, %s90
      %s91 = sphi 0, %s88
      %s92 = sphi 0, %s91
      %s108 = sphi 0, %s92
      %s112 = sphi 0, %s112
      %s114 = sphi 0, %s112
      %s115 = sphi 0, %s114
      %s129 = sphi 0, %s115
      %s133 = sphi 0, %s133
      %s135 = sphi 0, %s133
      %s136 = sphi 0, %s135
      %s150 = sphi 0, %s136
      %s154 = sphi 0, %s154
      %s156 = sphi 0, %s154
      %s157 = sphi 0, %s156
      %s171 = sphi 0, %s157
      %s175 = sphi 0, %s175
      %s177 = sphi 0, %s175
      %s178 = sphi 0, %s177
      %s192 = sphi 0, %s178
      %s196 = sphi 0, %s196
      %s198 = sphi 0, %s196
      %s199 = sphi 0, %s198
      %s213 = sphi 0, %s199
      %s217 = sphi 0, %s217
      %s219 = sphi 0, %s217
      %s220 = sphi 0, %s219
      %s234 = sphi 0, %s220
      %s238 = sphi 0, %s238
      %s240 = sphi 0, %s238
      %s241 = sphi 0, %s240
      %s255 = sphi 0, %s241
      %s259 = sphi 0, %s259
      %s261 = sphi 0, %s259
      %s262 = sphi 0, %s261
      %s276 = sphi 0, %s262
      %s280 = sphi 0, %s280
      %s282 = sphi 0, %s280
      %s283 = sphi 0, %s282
      %s297 = sphi 0, %s283
      %s301 = sphi 0, %s301
      %s303 = sphi 0, %s301
      %s304 = sphi 0, %s303
      %s318 = sphi 0, %s304
      %s322 = sphi 0, %s322
      %s324 = sphi 0, %s322
      %s325 = sphi 0, %s324
      %s339 = sphi 0, %s325
      %s343 = sphi 0, %s343
      %s345 = sphi 0, %s343
      %s346 = sphi 0, %s345
      %s360 = sphi 0, %s346
      %s364 = sphi 0, %s364
      %s366 = sphi 0, %s364
      %s367 = sphi 0, %s366
      %s381 = sphi 0, %s367
      %s385 = sphi 0, %s385
      %s387 = sphi 0, %s385
      %s388 = sphi 0, %s387
      %s402 = sphi 0, %s388
      %s406 = sphi 0, %s406
      %s408 = sphi 0, %s406
      %s409 = sphi 0, %s408
      %s423 = sphi 0, %s409
      %s429 = sphi 0, %s431
      %s432 = sphi 0, %s429
      %s433 = sphi 0, %s432
      %s449 = sphi 0, %s433
    $region4: #{tpu_custom_call.1} parent=1 // loop_header_branch
      %34 = sbr.rel (%p32) target = $region8
    $region5: #{tpu_custom_call.1} parent=1 // loop_body
      %s36 = ssub.s32 %s31, 1
      %s37 = ssub.s32 %s31, 2
      %s38 = sadd.s32 %s31, 1
      %s39 = ssub.s32 %s31, %s38
      %p40 = scmp.eq.s32.totalorder %s39, 0
      %s42 = sadd.s32 %s41, 1
      %s43 = scalar_select %p40, %s41, %s42
      %p46 = pneg %p40
      %p47 = scmp.eq.s32.totalorder %s31, 1
      %p48 = por %p46, %p47
      %p49 = scmp.ne.s32.totalorder %s41, %s44
      %p50 = scmp.eq.s32.totalorder %s31, 0
      %p51 = por %p49, %p50
      %p52 = scmp.ne.s32.totalorder %s41, %s44
      %p53 = scmp.eq.s32.totalorder %s36, 1
      %p54 = por %p52, %p53
      %p55 = scmp.ne.s32.totalorder %s44, %s45
      %p56 = scmp.eq.s32.totalorder %s36, 0
      %p57 = por %p55, %p56
      %p58 = scmp.ne.s32.totalorder %s44, %s45
      %p59 = scmp.eq.s32.totalorder %s37, 1
      %p60 = por %p58, %p59
      %p62 = scmp.ne.s32.totalorder %s45, %s61
      %p63 = scmp.eq.s32.totalorder %s37, 0
      %p64 = por %p62, %p63
      %s66 = sadd.s32 %s65, 1
      %p69 = scmp.eq.s32.totalorder %s31, 1
      %p70 = scmp.ne.s32.totalorder %s65, %s67
      %p71 = scmp.eq.s32.totalorder %s31, 0
      %p72 = por %p70, %p71
      %p73 = scmp.ne.s32.totalorder %s65, %s67
      %p74 = scmp.eq.s32.totalorder %s36, 1
      %p75 = por %p73, %p74
      %p76 = scmp.ne.s32.totalorder %s67, %s68
      %p77 = scmp.eq.s32.totalorder %s36, 0
      %p78 = por %p76, %p77
      %p79 = scmp.ne.s32.totalorder %s67, %s68
      %p80 = scmp.eq.s32.totalorder %s37, 1
      %p81 = por %p79, %p80
      %p83 = scmp.ne.s32.totalorder %s68, %s82
      %p84 = scmp.eq.s32.totalorder %s37, 0
      %p85 = por %p83, %p84
      %s86 = ssub.s32 %s31, %s38
      %p87 = scmp.eq.s32.totalorder %s86, 0
      %s89 = sadd.s32 %s88, 1
      %s90 = scalar_select %p87, %s88, %s89
      %p93 = pneg %p87
      %p94 = scmp.eq.s32.totalorder %s31, 1
      %p95 = por %p93, %p94
      %p96 = scmp.ne.s32.totalorder %s88, %s91
      %p97 = scmp.eq.s32.totalorder %s31, 0
      %p98 = por %p96, %p97
      %p99 = scmp.ne.s32.totalorder %s88, %s91
      %p100 = scmp.eq.s32.totalorder %s36, 1
      %p101 = por %p99, %p100
      %p102 = scmp.ne.s32.totalorder %s91, %s92
      %p103 = scmp.eq.s32.totalorder %s36, 0
      %p104 = por %p102, %p103
      %p105 = scmp.ne.s32.totalorder %s91, %s92
      %p106 = scmp.eq.s32.totalorder %s37, 1
      %p107 = por %p105, %p106
      %p109 = scmp.ne.s32.totalorder %s92, %s108
      %p110 = scmp.eq.s32.totalorder %s37, 0
      %p111 = por %p109, %p110
      %s113 = sadd.s32 %s112, 1
      %p116 = scmp.eq.s32.totalorder %s31, 1
      %p117 = scmp.ne.s32.totalorder %s112, %s114
      %p118 = scmp.eq.s32.totalorder %s31, 0
      %p119 = por %p117, %p118
      %p120 = scmp.ne.s32.totalorder %s112, %s114
      %p121 = scmp.eq.s32.totalorder %s36, 1
      %p122 = por %p120, %p121
      %p123 = scmp.ne.s32.totalorder %s114, %s115
      %p124 = scmp.eq.s32.totalorder %s36, 0
      %p125 = por %p123, %p124
      %p126 = scmp.ne.s32.totalorder %s114, %s115
      %p127 = scmp.eq.s32.totalorder %s37, 1
      %p128 = por %p126, %p127
      %p130 = scmp.ne.s32.totalorder %s115, %s129
      %p131 = scmp.eq.s32.totalorder %s37, 0
      %p132 = por %p130, %p131
      %s134 = sadd.s32 %s133, 1
      %p137 = scmp.eq.s32.totalorder %s31, 1
      %p138 = scmp.ne.s32.totalorder %s133, %s135
      %p139 = scmp.eq.s32.totalorder %s31, 0
      %p140 = por %p138, %p139
      %p141 = scmp.ne.s32.totalorder %s133, %s135
      %p142 = scmp.eq.s32.totalorder %s36, 1
      %p143 = por %p141, %p142
      %p144 = scmp.ne.s32.totalorder %s135, %s136
      %p145 = scmp.eq.s32.totalorder %s36, 0
      %p146 = por %p144, %p145
      %p147 = scmp.ne.s32.totalorder %s135, %s136
      %p148 = scmp.eq.s32.totalorder %s37, 1
      %p149 = por %p147, %p148
      %p151 = scmp.ne.s32.totalorder %s136, %s150
      %p152 = scmp.eq.s32.totalorder %s37, 0
      %p153 = por %p151, %p152
      %s155 = sadd.s32 %s154, 1
      %p158 = scmp.eq.s32.totalorder %s31, 1
      %p159 = scmp.ne.s32.totalorder %s154, %s156
      %p160 = scmp.eq.s32.totalorder %s31, 0
      %p161 = por %p159, %p160
      %p162 = scmp.ne.s32.totalorder %s154, %s156
      %p163 = scmp.eq.s32.totalorder %s36, 1
      %p164 = por %p162, %p163
      %p165 = scmp.ne.s32.totalorder %s156, %s157
      %p166 = scmp.eq.s32.totalorder %s36, 0
      %p167 = por %p165, %p166
      %p168 = scmp.ne.s32.totalorder %s156, %s157
      %p169 = scmp.eq.s32.totalorder %s37, 1
      %p170 = por %p168, %p169
      %p172 = scmp.ne.s32.totalorder %s157, %s171
      %p173 = scmp.eq.s32.totalorder %s37, 0
      %p174 = por %p172, %p173
      %s176 = sadd.s32 %s175, 1
      %p179 = scmp.eq.s32.totalorder %s31, 1
      %p180 = scmp.ne.s32.totalorder %s175, %s177
      %p181 = scmp.eq.s32.totalorder %s31, 0
      %p182 = por %p180, %p181
      %p183 = scmp.ne.s32.totalorder %s175, %s177
      %p184 = scmp.eq.s32.totalorder %s36, 1
      %p185 = por %p183, %p184
      %p186 = scmp.ne.s32.totalorder %s177, %s178
      %p187 = scmp.eq.s32.totalorder %s36, 0
      %p188 = por %p186, %p187
      %p189 = scmp.ne.s32.totalorder %s177, %s178
      %p190 = scmp.eq.s32.totalorder %s37, 1
      %p191 = por %p189, %p190
      %p193 = scmp.ne.s32.totalorder %s178, %s192
      %p194 = scmp.eq.s32.totalorder %s37, 0
      %p195 = por %p193, %p194
      %s197 = sadd.s32 %s196, 1
      %p200 = scmp.eq.s32.totalorder %s31, 1
      %p201 = scmp.ne.s32.totalorder %s196, %s198
      %p202 = scmp.eq.s32.totalorder %s31, 0
      %p203 = por %p201, %p202
      %p204 = scmp.ne.s32.totalorder %s196, %s198
      %p205 = scmp.eq.s32.totalorder %s36, 1
      %p206 = por %p204, %p205
      %p207 = scmp.ne.s32.totalorder %s198, %s199
      %p208 = scmp.eq.s32.totalorder %s36, 0
      %p209 = por %p207, %p208
      %p210 = scmp.ne.s32.totalorder %s198, %s199
      %p211 = scmp.eq.s32.totalorder %s37, 1
      %p212 = por %p210, %p211
      %p214 = scmp.ne.s32.totalorder %s199, %s213
      %p215 = scmp.eq.s32.totalorder %s37, 0
      %p216 = por %p214, %p215
      %s218 = sadd.s32 %s217, 1
      %p221 = scmp.eq.s32.totalorder %s31, 1
      %p222 = scmp.ne.s32.totalorder %s217, %s219
      %p223 = scmp.eq.s32.totalorder %s31, 0
      %p224 = por %p222, %p223
      %p225 = scmp.ne.s32.totalorder %s217, %s219
      %p226 = scmp.eq.s32.totalorder %s36, 1
      %p227 = por %p225, %p226
      %p228 = scmp.ne.s32.totalorder %s219, %s220
      %p229 = scmp.eq.s32.totalorder %s36, 0
      %p230 = por %p228, %p229
      %p231 = scmp.ne.s32.totalorder %s219, %s220
      %p232 = scmp.eq.s32.totalorder %s37, 1
      %p233 = por %p231, %p232
      %p235 = scmp.ne.s32.totalorder %s220, %s234
      %p236 = scmp.eq.s32.totalorder %s37, 0
      %p237 = por %p235, %p236
      %s239 = sadd.s32 %s238, 1
      %p242 = scmp.eq.s32.totalorder %s31, 1
      %p243 = scmp.ne.s32.totalorder %s238, %s240
      %p244 = scmp.eq.s32.totalorder %s31, 0
      %p245 = por %p243, %p244
      %p246 = scmp.ne.s32.totalorder %s238, %s240
      %p247 = scmp.eq.s32.totalorder %s36, 1
      %p248 = por %p246, %p247
      %p249 = scmp.ne.s32.totalorder %s240, %s241
      %p250 = scmp.eq.s32.totalorder %s36, 0
      %p251 = por %p249, %p250
      %p252 = scmp.ne.s32.totalorder %s240, %s241
      %p253 = scmp.eq.s32.totalorder %s37, 1
      %p254 = por %p252, %p253
      %p256 = scmp.ne.s32.totalorder %s241, %s255
      %p257 = scmp.eq.s32.totalorder %s37, 0
      %p258 = por %p256, %p257
      %s260 = sadd.s32 %s259, 1
      %p263 = scmp.eq.s32.totalorder %s31, 1
      %p264 = scmp.ne.s32.totalorder %s259, %s261
      %p265 = scmp.eq.s32.totalorder %s31, 0
      %p266 = por %p264, %p265
      %p267 = scmp.ne.s32.totalorder %s259, %s261
      %p268 = scmp.eq.s32.totalorder %s36, 1
      %p269 = por %p267, %p268
      %p270 = scmp.ne.s32.totalorder %s261, %s262
      %p271 = scmp.eq.s32.totalorder %s36, 0
      %p272 = por %p270, %p271
      %p273 = scmp.ne.s32.totalorder %s261, %s262
      %p274 = scmp.eq.s32.totalorder %s37, 1
      %p275 = por %p273, %p274
      %p277 = scmp.ne.s32.totalorder %s262, %s276
      %p278 = scmp.eq.s32.totalorder %s37, 0
      %p279 = por %p277, %p278
      %s281 = sadd.s32 %s280, 1
      %p284 = scmp.eq.s32.totalorder %s31, 1
      %p285 = scmp.ne.s32.totalorder %s280, %s282
      %p286 = scmp.eq.s32.totalorder %s31, 0
      %p287 = por %p285, %p286
      %p288 = scmp.ne.s32.totalorder %s280, %s282
      %p289 = scmp.eq.s32.totalorder %s36, 1
      %p290 = por %p288, %p289
      %p291 = scmp.ne.s32.totalorder %s282, %s283
      %p292 = scmp.eq.s32.totalorder %s36, 0
      %p293 = por %p291, %p292
      %p294 = scmp.ne.s32.totalorder %s282, %s283
      %p295 = scmp.eq.s32.totalorder %s37, 1
      %p296 = por %p294, %p295
      %p298 = scmp.ne.s32.totalorder %s283, %s297
      %p299 = scmp.eq.s32.totalorder %s37, 0
      %p300 = por %p298, %p299
      %s302 = sadd.s32 %s301, 1
      %p305 = scmp.eq.s32.totalorder %s31, 1
      %p306 = scmp.ne.s32.totalorder %s301, %s303
      %p307 = scmp.eq.s32.totalorder %s31, 0
      %p308 = por %p306, %p307
      %p309 = scmp.ne.s32.totalorder %s301, %s303
      %p310 = scmp.eq.s32.totalorder %s36, 1
      %p311 = por %p309, %p310
      %p312 = scmp.ne.s32.totalorder %s303, %s304
      %p313 = scmp.eq.s32.totalorder %s36, 0
      %p314 = por %p312, %p313
      %p315 = scmp.ne.s32.totalorder %s303, %s304
      %p316 = scmp.eq.s32.totalorder %s37, 1
      %p317 = por %p315, %p316
      %p319 = scmp.ne.s32.totalorder %s304, %s318
      %p320 = scmp.eq.s32.totalorder %s37, 0
      %p321 = por %p319, %p320
      %s323 = sadd.s32 %s322, 1
      %p326 = scmp.eq.s32.totalorder %s31, 1
      %p327 = scmp.ne.s32.totalorder %s322, %s324
      %p328 = scmp.eq.s32.totalorder %s31, 0
      %p329 = por %p327, %p328
      %p330 = scmp.ne.s32.totalorder %s322, %s324
      %p331 = scmp.eq.s32.totalorder %s36, 1
      %p332 = por %p330, %p331
      %p333 = scmp.ne.s32.totalorder %s324, %s325
      %p334 = scmp.eq.s32.totalorder %s36, 0
      %p335 = por %p333, %p334
      %p336 = scmp.ne.s32.totalorder %s324, %s325
      %p337 = scmp.eq.s32.totalorder %s37, 1
      %p338 = por %p336, %p337
      %p340 = scmp.ne.s32.totalorder %s325, %s339
      %p341 = scmp.eq.s32.totalorder %s37, 0
      %p342 = por %p340, %p341
      %s344 = sadd.s32 %s343, 1
      %p347 = scmp.eq.s32.totalorder %s31, 1
      %p348 = scmp.ne.s32.totalorder %s343, %s345
      %p349 = scmp.eq.s32.totalorder %s31, 0
      %p350 = por %p348, %p349
      %p351 = scmp.ne.s32.totalorder %s343, %s345
      %p352 = scmp.eq.s32.totalorder %s36, 1
      %p353 = por %p351, %p352
      %p354 = scmp.ne.s32.totalorder %s345, %s346
      %p355 = scmp.eq.s32.totalorder %s36, 0
      %p356 = por %p354, %p355
      %p357 = scmp.ne.s32.totalorder %s345, %s346
      %p358 = scmp.eq.s32.totalorder %s37, 1
      %p359 = por %p357, %p358
      %p361 = scmp.ne.s32.totalorder %s346, %s360
      %p362 = scmp.eq.s32.totalorder %s37, 0
      %p363 = por %p361, %p362
      %s365 = sadd.s32 %s364, 1
      %p368 = scmp.eq.s32.totalorder %s31, 1
      %p369 = scmp.ne.s32.totalorder %s364, %s366
      %p370 = scmp.eq.s32.totalorder %s31, 0
      %p371 = por %p369, %p370
      %p372 = scmp.ne.s32.totalorder %s364, %s366
      %p373 = scmp.eq.s32.totalorder %s36, 1
      %p374 = por %p372, %p373
      %p375 = scmp.ne.s32.totalorder %s366, %s367
      %p376 = scmp.eq.s32.totalorder %s36, 0
      %p377 = por %p375, %p376
      %p378 = scmp.ne.s32.totalorder %s366, %s367
      %p379 = scmp.eq.s32.totalorder %s37, 1
      %p380 = por %p378, %p379
      %p382 = scmp.ne.s32.totalorder %s367, %s381
      %p383 = scmp.eq.s32.totalorder %s37, 0
      %p384 = por %p382, %p383
      %s386 = sadd.s32 %s385, 1
      %p389 = scmp.eq.s32.totalorder %s31, 1
      %p390 = scmp.ne.s32.totalorder %s385, %s387
      %p391 = scmp.eq.s32.totalorder %s31, 0
      %p392 = por %p390, %p391
      %p393 = scmp.ne.s32.totalorder %s385, %s387
      %p394 = scmp.eq.s32.totalorder %s36, 1
      %p395 = por %p393, %p394
      %p396 = scmp.ne.s32.totalorder %s387, %s388
      %p397 = scmp.eq.s32.totalorder %s36, 0
      %p398 = por %p396, %p397
      %p399 = scmp.ne.s32.totalorder %s387, %s388
      %p400 = scmp.eq.s32.totalorder %s37, 1
      %p401 = por %p399, %p400
      %p403 = scmp.ne.s32.totalorder %s388, %s402
      %p404 = scmp.eq.s32.totalorder %s37, 0
      %p405 = por %p403, %p404
      %s407 = sadd.s32 %s406, 1
      %p410 = scmp.eq.s32.totalorder %s31, 1
      %p411 = scmp.ne.s32.totalorder %s406, %s408
      %p412 = scmp.eq.s32.totalorder %s31, 0
      %p413 = por %p411, %p412
      %p414 = scmp.ne.s32.totalorder %s406, %s408
      %p415 = scmp.eq.s32.totalorder %s36, 1
      %p416 = por %p414, %p415
      %p417 = scmp.ne.s32.totalorder %s408, %s409
      %p418 = scmp.eq.s32.totalorder %s36, 0
      %p419 = por %p417, %p418
      %p420 = scmp.ne.s32.totalorder %s408, %s409
      %p421 = scmp.eq.s32.totalorder %s37, 1
      %p422 = por %p420, %p421
      %p424 = scmp.ne.s32.totalorder %s409, %s423
      %p425 = scmp.eq.s32.totalorder %s37, 0
      %p426 = por %p424, %p425
      %s427 = ssub.s32 %s31, %s38
      %p428 = scmp.eq.s32.totalorder %s427, 0
      %s430 = sadd.s32 %s429, 1
      %s431 = scalar_select %p428, %s429, %s430
      %p434 = pneg %p428
      %p435 = scmp.eq.s32.totalorder %s31, 1
      %p436 = por %p434, %p435
      %p437 = scmp.ne.s32.totalorder %s429, %s432
      %p438 = scmp.eq.s32.totalorder %s31, 0
      %p439 = por %p437, %p438
      %p440 = scmp.ne.s32.totalorder %s429, %s432
      %p441 = scmp.eq.s32.totalorder %s36, 1
      %p442 = por %p440, %p441
      %p443 = scmp.ne.s32.totalorder %s432, %s433
      %p444 = scmp.eq.s32.totalorder %s36, 0
      %p445 = por %p443, %p444
      %p446 = scmp.ne.s32.totalorder %s432, %s433
      %p447 = scmp.eq.s32.totalorder %s37, 1
      %p448 = por %p446, %p447
      %p450 = scmp.ne.s32.totalorder %s433, %s449
      %p451 = scmp.eq.s32.totalorder %s37, 0
      %p452 = por %p450, %p451
      %p453 = scmp.le.s32.totalorder 1, %s31
      %p454 = scmp.lt.s32.totalorder %s31, 3
      %p455 = pnand %p453, %p454
      %p456 = pneg %p455
      // Predicated region
      $region9: #{tpu_custom_call.1} parent=5 // pred_check
        _
      $region10: #{tpu_custom_call.1} parent=5 // pred_check_branch
        %458 = sbr.rel (%p455) target = $region12
      $region11: #{tpu_custom_call.1} parent=5 // pred_region
        %s459 = ssub.s32 %s31, 1
        // Predicated region
        $region13: #{tpu_custom_call.1} parent=11 // pred_check
          %p460 = pneg %p78
        $region14: #{tpu_custom_call.1} parent=11 // pred_check_branch
          %462 = sbr.rel (%p460) target = $region16
        $region15: #{tpu_custom_call.1} parent=11 // pred_region
          _
        $region16: #{tpu_custom_call.1} parent=11 // pred_fallthru
          _
        // Predicated region
        $region17: #{tpu_custom_call.1} parent=11 // pred_check
          %p463 = pneg %p125
        $region18: #{tpu_custom_call.1} parent=11 // pred_check_branch
          %465 = sbr.rel (%p463) target = $region20
        $region19: #{tpu_custom_call.1} parent=11 // pred_region
          %s467 = ssub.s32 64, 64
          %468 = vsyncadd [#allocation3], %s467
          %s470 = sshll.u32 [#allocation2], 4
          %s471 = int_to_ptr.vmem [resolvable:$true] %s470
          %473 = dma.hbm_to_vmem [thread:$0]  %s3, 64, %s471, [#allocation3]
        $region20: #{tpu_custom_call.1} parent=11 // pred_fallthru
          _
        // Predicated region
        $region21: #{tpu_custom_call.1} parent=11 // pred_check
          %p474 = pneg %p146
        $region22: #{tpu_custom_call.1} parent=11 // pred_check_branch
          %476 = sbr.rel (%p474) target = $region24
        $region23: #{tpu_custom_call.1} parent=11 // pred_region
          _
        $region24: #{tpu_custom_call.1} parent=11 // pred_fallthru
          _
        // Predicated region
        $region25: #{tpu_custom_call.1} parent=11 // pred_check
          %p477 = pneg %p167
        $region26: #{tpu_custom_call.1} parent=11 // pred_check_branch
          %479 = sbr.rel (%p477) target = $region28
        $region27: #{tpu_custom_call.1} parent=11 // pred_region
          %s481 = ssub.s32 16, 16
          %482 = vsyncadd [#allocation6], %s481
          %s484 = sshll.u32 [#allocation5], 4
          %s485 = int_to_ptr.vmem [resolvable:$true] %s484
          %487 = dma.hbm_to_vmem [thread:$0]  %s5, 16, %s485, [#allocation6]
        $region28: #{tpu_custom_call.1} parent=11 // pred_fallthru
          _
        // Predicated region
        $region29: #{tpu_custom_call.1} parent=11 // pred_check
          %p488 = pneg %p188
        $region30: #{tpu_custom_call.1} parent=11 // pred_check_branch
          %490 = sbr.rel (%p488) target = $region32
        $region31: #{tpu_custom_call.1} parent=11 // pred_region
          _
        $region32: #{tpu_custom_call.1} parent=11 // pred_fallthru
          _
        // Predicated region
        $region33: #{tpu_custom_call.1} parent=11 // pred_check
          %p491 = pneg %p209
        $region34: #{tpu_custom_call.1} parent=11 // pred_check_branch
          %493 = sbr.rel (%p491) target = $region36
        $region35: #{tpu_custom_call.1} parent=11 // pred_region
          %s495 = ssub.s32 16, 16
          %496 = vsyncadd [#allocation6], %s495
          %s498 = sshll.u32 [#allocation7], 4
          %s499 = int_to_ptr.vmem [resolvable:$true] %s498
          %501 = dma.hbm_to_vmem [thread:$0]  %s7, 16, %s499, [#allocation6]
        $region36: #{tpu_custom_call.1} parent=11 // pred_fallthru
          _
        // Predicated region
        $region37: #{tpu_custom_call.1} parent=11 // pred_check
          %p502 = pneg %p230
        $region38: #{tpu_custom_call.1} parent=11 // pred_check_branch
          %504 = sbr.rel (%p502) target = $region40
        $region39: #{tpu_custom_call.1} parent=11 // pred_region
          _
        $region40: #{tpu_custom_call.1} parent=11 // pred_fallthru
          _
        // Predicated region
        $region41: #{tpu_custom_call.1} parent=11 // pred_check
          %p505 = pneg %p251
        $region42: #{tpu_custom_call.1} parent=11 // pred_check_branch
          %507 = sbr.rel (%p505) target = $region44
        $region43: #{tpu_custom_call.1} parent=11 // pred_region
          %s509 = ssub.s32 16, 16
          %510 = vsyncadd [#allocation9], %s509
          %s512 = sshll.u32 [#allocation8], 4
          %s513 = int_to_ptr.vmem [resolvable:$true] %s512
          %515 = dma.hbm_to_vmem [thread:$0]  %s9, 16, %s513, [#allocation9]
        $region44: #{tpu_custom_call.1} parent=11 // pred_fallthru
          _
        // Predicated region
        $region45: #{tpu_custom_call.1} parent=11 // pred_check
          %p516 = pneg %p272
        $region46: #{tpu_custom_call.1} parent=11 // pred_check_branch
          %518 = sbr.rel (%p516) target = $region48
        $region47: #{tpu_custom_call.1} parent=11 // pred_region
          _
        $region48: #{tpu_custom_call.1} parent=11 // pred_fallthru
          _
        // Predicated region
        $region49: #{tpu_custom_call.1} parent=11 // pred_check
          %p519 = pneg %p293
        $region50: #{tpu_custom_call.1} parent=11 // pred_check_branch
          %521 = sbr.rel (%p519) target = $region52
        $region51: #{tpu_custom_call.1} parent=11 // pred_region
          %s523 = ssub.s32 16, 16
          %524 = vsyncadd [#allocation9], %s523
          %s526 = sshll.u32 [#allocation10], 4
          %s527 = int_to_ptr.vmem [resolvable:$true] %s526
          %529 = dma.hbm_to_vmem [thread:$0]  %s11, 16, %s527, [#allocation9]
        $region52: #{tpu_custom_call.1} parent=11 // pred_fallthru
          _
        // Predicated region
        $region53: #{tpu_custom_call.1} parent=11 // pred_check
          %p530 = pneg %p314
        $region54: #{tpu_custom_call.1} parent=11 // pred_check_branch
          %532 = sbr.rel (%p530) target = $region56
        $region55: #{tpu_custom_call.1} parent=11 // pred_region
          %s534 = ssub.s32 256, 256
          %535 = vsyncadd [#allocation12], %s534
          %s536 = sshll.u32 [#allocation11], 4
          %s537 = int_to_ptr.vmem [resolvable:$true] %s536
          %542 = dma.hbm_to_vmem [thread:$0]  %s12, 256, %s537, [#allocation12], 64, 64, 4
        $region56: #{tpu_custom_call.1} parent=11 // pred_fallthru
          _
        // Predicated region
        $region57: #{tpu_custom_call.1} parent=11 // pred_check
          %p543 = pneg %p335
        $region58: #{tpu_custom_call.1} parent=11 // pred_check_branch
          %545 = sbr.rel (%p543) target = $region60
        $region59: #{tpu_custom_call.1} parent=11 // pred_region
          %s547 = ssub.s32 16, 16
          %548 = vsyncadd [#allocation12], %s547
          %s550 = sshll.u32 [#allocation13], 4
          %s551 = int_to_ptr.vmem [resolvable:$true] %s550
          %553 = dma.hbm_to_vmem [thread:$0]  %s13, 16, %s551, [#allocation12]
        $region60: #{tpu_custom_call.1} parent=11 // pred_fallthru
          _
        // Predicated region
        $region61: #{tpu_custom_call.1} parent=11 // pred_check
          %p554 = pneg %p356
        $region62: #{tpu_custom_call.1} parent=11 // pred_check_branch
          %556 = sbr.rel (%p554) target = $region64
        $region63: #{tpu_custom_call.1} parent=11 // pred_region
          _
        $region64: #{tpu_custom_call.1} parent=11 // pred_fallthru
          _
        // Predicated region
        $region65: #{tpu_custom_call.1} parent=11 // pred_check
          %p557 = pneg %p377
        $region66: #{tpu_custom_call.1} parent=11 // pred_check_branch
          %559 = sbr.rel (%p557) target = $region68
        $region67: #{tpu_custom_call.1} parent=11 // pred_region
          _
        $region68: #{tpu_custom_call.1} parent=11 // pred_fallthru
          _
        // Predicated region
        $region69: #{tpu_custom_call.1} parent=11 // pred_check
          %p560 = pneg %p398
        $region70: #{tpu_custom_call.1} parent=11 // pred_check_branch
          %562 = sbr.rel (%p560) target = $region72
        $region71: #{tpu_custom_call.1} parent=11 // pred_region
          _
        $region72: #{tpu_custom_call.1} parent=11 // pred_fallthru
          _
        // Predicated region
        $region73: #{tpu_custom_call.1} parent=11 // pred_check
          %p563 = pneg %p419
        $region74: #{tpu_custom_call.1} parent=11 // pred_check_branch
          %565 = sbr.rel (%p563) target = $region76
        $region75: #{tpu_custom_call.1} parent=11 // pred_region
          _
        $region76: #{tpu_custom_call.1} parent=11 // pred_fallthru
          _
      $region12: #{tpu_custom_call.1} parent=5 // pred_fallthru
        _
      %p566 = scmp.lt.s32.totalorder %s31, 2
      // Predicated region
      $region77: #{tpu_custom_call.1} parent=5 // pred_check
        %p567 = pneg %p566
      $region78: #{tpu_custom_call.1} parent=5 // pred_check_branch
        %569 = sbr.rel (%p567) target = $region80
      $region79: #{tpu_custom_call.1} parent=5 // pred_region
        // Predicated region
        $region81: #{tpu_custom_call.1} parent=79 // pred_check
          %p570 = pneg %p51
        $region82: #{tpu_custom_call.1} parent=79 // pred_check_branch
          %572 = sbr.rel (%p570) target = $region84
        $region83: #{tpu_custom_call.1} parent=79 // pred_region
          %p573 = scmp.lt.s32.totalorder %s31, 1
          %s574 = scalar_select %p573, %s31, 1
          %s575 = smul.addr %s574, 8
          %s576 = scalar_lea.vmem %s0, %s575
        $region84: #{tpu_custom_call.1} parent=79 // pred_fallthru
          _
        // Predicated region
        $region85: #{tpu_custom_call.1} parent=79 // pred_check
          %p577 = pneg %p98
        $region86: #{tpu_custom_call.1} parent=79 // pred_check_branch
          %579 = sbr.rel (%p577) target = $region88
        $region87: #{tpu_custom_call.1} parent=79 // pred_region
          %p580 = scmp.lt.s32.totalorder %s31, 1
          %s581 = scalar_select %p580, %s31, 1
          %s582 = smul.addr %s581, 8
          %s583 = scalar_lea.vmem %s2, %s582
        $region88: #{tpu_custom_call.1} parent=79 // pred_fallthru
          _
      $region80: #{tpu_custom_call.1} parent=5 // pred_fallthru
        _
      %p584 = scmp.le.s32.totalorder 1, %s31
      %p585 = scmp.lt.s32.totalorder %s31, 3
      %p586 = pnand %p584, %p585
      %p587 = pneg %p586
      // Predicated region
      $region89: #{tpu_custom_call.1} parent=5 // pred_check
        _
      $region90: #{tpu_custom_call.1} parent=5 // pred_check_branch
        %589 = sbr.rel (%p586) target = $region92
      $region91: #{tpu_custom_call.1} parent=5 // pred_region
        %s590 = ssub.s32 %s31, 1
        // Predicated region
        $region93: #{tpu_custom_call.1} parent=91 // pred_check
          %p591 = pneg %p125
        $region94: #{tpu_custom_call.1} parent=91 // pred_check_branch
          %593 = sbr.rel (%p591) target = $region96
        $region95: #{tpu_custom_call.1} parent=91 // pred_region
          %594 = dma.done [#allocation3], 64
        $region96: #{tpu_custom_call.1} parent=91 // pred_fallthru
          _
        // Predicated region
        $region97: #{tpu_custom_call.1} parent=91 // pred_check
          %p595 = pneg %p167
        $region98: #{tpu_custom_call.1} parent=91 // pred_check_branch
          %597 = sbr.rel (%p595) target = $region100
        $region99: #{tpu_custom_call.1} parent=91 // pred_region
          %598 = dma.done [#allocation6], 16
        $region100: #{tpu_custom_call.1} parent=91 // pred_fallthru
          _
        // Predicated region
        $region101: #{tpu_custom_call.1} parent=91 // pred_check
          %p599 = pneg %p209
        $region102: #{tpu_custom_call.1} parent=91 // pred_check_branch
          %601 = sbr.rel (%p599) target = $region104
        $region103: #{tpu_custom_call.1} parent=91 // pred_region
          %602 = dma.done [#allocation6], 16
        $region104: #{tpu_custom_call.1} parent=91 // pred_fallthru
          _
        // Predicated region
        $region105: #{tpu_custom_call.1} parent=91 // pred_check
          %p603 = pneg %p251
        $region106: #{tpu_custom_call.1} parent=91 // pred_check_branch
          %605 = sbr.rel (%p603) target = $region108
        $region107: #{tpu_custom_call.1} parent=91 // pred_region
          %606 = dma.done [#allocation9], 16
        $region108: #{tpu_custom_call.1} parent=91 // pred_fallthru
          _
        // Predicated region
        $region109: #{tpu_custom_call.1} parent=91 // pred_check
          %p607 = pneg %p293
        $region110: #{tpu_custom_call.1} parent=91 // pred_check_branch
          %609 = sbr.rel (%p607) target = $region112
        $region111: #{tpu_custom_call.1} parent=91 // pred_region
          %610 = dma.done [#allocation9], 16
        $region112: #{tpu_custom_call.1} parent=91 // pred_fallthru
          _
        // Predicated region
        $region113: #{tpu_custom_call.1} parent=91 // pred_check
          %p611 = pneg %p314
        $region114: #{tpu_custom_call.1} parent=91 // pred_check_branch
          %613 = sbr.rel (%p611) target = $region116
        $region115: #{tpu_custom_call.1} parent=91 // pred_region
          %614 = dma.done [#allocation12], 256
        $region116: #{tpu_custom_call.1} parent=91 // pred_fallthru
          _
        // Predicated region
        $region117: #{tpu_custom_call.1} parent=91 // pred_check
          %p615 = pneg %p335
        $region118: #{tpu_custom_call.1} parent=91 // pred_check_branch
          %617 = sbr.rel (%p615) target = $region120
        $region119: #{tpu_custom_call.1} parent=91 // pred_region
          %618 = dma.done [#allocation12], 16
        $region120: #{tpu_custom_call.1} parent=91 // pred_fallthru
          _
        %p619 = scmp.lt.s32.totalorder %s36, 1
        %s620 = scalar_select %p619, %s36, 1
        %s621 = smul.addr %s620, 8
        %s622 = scalar_lea.vmem %s0, %s621
        %p623 = pneg %p57
        %p624 = pneg %p54
        %p625 = pneg %p78
        %p626 = pneg %p75
        %p627 = scmp.lt.s32.totalorder %s36, 1
        %s628 = scalar_select %p627, %s36, 1
        %s629 = smul.addr %s628, 8
        %s630 = scalar_lea.vmem %s2, %s629
        %p631 = pneg %p104
        %p632 = pneg %p101
        %p633 = pneg %p125
        %p634 = pneg %p122
        %p635 = pneg %p146
        %p636 = pneg %p143
        %p637 = pneg %p167
        %p638 = pneg %p164
        %p639 = pneg %p188
        %p640 = pneg %p185
        %p641 = pneg %p209
        %p642 = pneg %p206
        %p643 = pneg %p230
        %p644 = pneg %p227
        %p645 = pneg %p251
        %p646 = pneg %p248
        %p647 = pneg %p272
        %p648 = pneg %p269
        %p649 = pneg %p293
        %p650 = pneg %p290
        %p651 = pneg %p314
        %p652 = pneg %p311
        %p653 = pneg %p335
        %p654 = pneg %p332
        %p655 = pneg %p356
        %p656 = pneg %p353
        %p657 = pneg %p377
        %p658 = pneg %p374
        %p659 = pneg %p398
        %p660 = pneg %p395
        %p661 = pneg %p419
        %p662 = pneg %p416
        %p663 = pneg %p445
        %p664 = pneg %p442
        %s665 = sand.u32 %s432, 1
        %s666 = scalar_lea.sflag [#allocation4], %s665
        %s667 = sand.u32 %s432, 1
        %s668 = smul.addr %s667, 8
        %s669 = scalar_lea.vmem [#allocation14], %s668
        %p670 = scmp.lt.s32.totalorder %s36, 1
        %s671 = scalar_select %p670, %s36, 1
        %s672 = smul.addr %s671, 8
        %s673 = scalar_lea.vmem %s0, %s672
        %p674 = scmp.lt.s32.totalorder %s36, 1
        %s675 = scalar_select %p674, %s36, 1
        %s676 = smul.addr %s675, 8
        %s677 = scalar_lea.vmem %s2, %s676
        %v679 = vld [vmem:[%s673] sm:$0xff]
        %v680 = vld [vmem:[%s1] sm:$0xff]
        %v681 = vld [vmem:[%s1 + $0x8] sm:$0xff]
        %v682 = vld [vmem:[%s4] sm:$0x1]
        %v683 = vld [vmem:[#allocation5] sm:$0x1]
        %vm684 = vcmask 261120
        %v685 = vsel %vm684, %v679, 0.0
        %686 = vadd.xlane.f32.xlu0 %v685
        %v687 = vpop.xlane.xlu0 %686
        %v688 = vrcp.pop 32.0
        %v689 = vmul.f32 %v687, %v688
        %v690 = vsub.f32 %v679, %v689
        %v691 = vmul.f32 %v690, %v690
        %v692 = vsel %vm684, %v691, 0.0
        %693 = vadd.xlane.f32.xlu0 %v692
        %v694 = vpop.xlane.xlu0 %693
        %v695 = vmul.f32 %v694, %v688
        %v696 = vadd.f32 %v695, 1e-05
        %v697 = vrsqrt.pop %v696
        %v698 = vmul.f32 %v690, %v697
        %v700 = vlaneseq
        %v701 = vshrl.u32 %v700, 7
        %v702 = vsub.s32 0, %v701
        %v703 = vrot.slane %v682, %v702
        %v705 = vmul.f32 %v698, %v703
        %v707 = vlaneseq
        %v708 = vshrl.u32 %v707, 7
        %v709 = vsub.s32 0, %v708
        %v710 = vrot.slane %v683, %v709
        %v712 = vadd.f32 %v705, %v710
        %v713 = vsel %vm684, %v680, 0.0
        %714 = vadd.xlane.f32.xlu0 %v713
        %v715 = vpop.xlane.xlu0 %714
        %v716 = vsel %vm684, %v681, 0.0
        %717 = vadd.xlane.f32.xlu0 %v716
        %v718 = vpop.xlane.xlu0 %717
        %v719 = vmul.f32 %v715, %v688
        %v720 = vmul.f32 %v718, %v688
        %v721 = vsub.f32 %v680, %v719
        %v722 = vsub.f32 %v681, %v720
        %v723 = vmul.f32 %v721, %v721
        %v724 = vmul.f32 %v722, %v722
        %v725 = vsel %vm684, %v723, 0.0
        %726 = vadd.xlane.f32.xlu0 %v725
        %v727 = vpop.xlane.xlu0 %726
        %v728 = vsel %vm684, %v724, 0.0
        %729 = vadd.xlane.f32.xlu0 %v728
        %v730 = vpop.xlane.xlu0 %729
        %v731 = vmul.f32 %v727, %v688
        %v732 = vmul.f32 %v730, %v688
        %v733 = vadd.f32 %v731, 1e-05
        %v734 = vadd.f32 %v732, 1e-05
        %v735 = vrsqrt.pop %v733
        %v736 = vrsqrt.pop %v734
        %v737 = vmul.f32 %v721, %v735
        %v738 = vmul.f32 %v722, %v736
        %v739 = vmul.f32 %v737, %v703
        %v740 = vmul.f32 %v738, %v703
        %v741 = vadd.f32 %v739, %v710
        %v742 = vadd.f32 %v740, %v710
        %v743 = vpack.c.bf16 %v712, %v712
        %v744 = vld [vmem:[%s6] sm:$0xf]
        %v745 = vld [vmem:[%s6 + $0x4] sm:$0xf]
        %v746 = vld [vmem:[%s6 + $0x8] sm:$0xf]
        %v747 = vld [vmem:[%s6 + $0xc] sm:$0xf]
        %v748 = vld [vmem:[#allocation7] sm:$0x1]
        %v750 = vlaneseq
        %v751 = vshrl.u32 %v750, 7
        %v752 = vsub.s32 0, %v751
        %v753 = vrot.slane %v748, %v752
        %v759 = vunpack.c.l.b16 %v744
        %v760 = vunpack.c.l.b16 %v745
        %v761 = vunpack.c.l.b16 %v746
        %v762 = vunpack.c.l.b16 %v747
        %v763 = vpack.c.b16 %v760, %v759
        %v764 = vpack.c.b16 %v762, %v761
        %v768 = vsel %vm684, %v743, 0
        %770 = vmatprep.subr.bf16.mxu0 0
        %771 = vmatpush1.bf16.msra.mxu0 %v763
        %772 = vmatprep.subr.bf16.mxu0 0
        %773 = vmatpush1.bf16.msra.mxu0 %v764
        %774 = vmatprep.subr.bf16.mxu0 0
        %775 = vmatpush1.bf16.msra.mxu0 0
        %776 = vmatprep.subr.bf16.mxu0 0
        %777 = vmatpush1.bf16.msra.mxu0 0
        %778 = vmatprep.subr.bf16.mxu0 0
        %779 = vmatpush1.bf16.msra.mxu0 0
        %780 = vmatprep.subr.bf16.mxu0 0
        %781 = vmatpush1.bf16.msra.mxu0 0
        %782 = vmatprep.subr.bf16.mxu0 0
        %783 = vmatpush1.bf16.msra.mxu0 0
        %784 = vmatprep.subr.bf16.mxu0 0
        %785 = vmatpush1.bf16.msra.mxu0 0
        %786 = vmatprep.subr.bf16.mxu0 0
        %787 = vmatpush1.bf16.msra.mxu0 0
        %788 = vmatprep.subr.bf16.mxu0 0
        %789 = vmatpush1.bf16.msra.mxu0 0
        %790 = vmatprep.subr.bf16.mxu0 0
        %791 = vmatpush1.bf16.msra.mxu0 0
        %792 = vmatprep.subr.bf16.mxu0 0
        %793 = vmatpush1.bf16.msra.mxu0 0
        %794 = vmatprep.subr.bf16.mxu0 0
        %795 = vmatpush1.bf16.msra.mxu0 0
        %796 = vmatprep.subr.bf16.mxu0 0
        %797 = vmatpush1.bf16.msra.mxu0 0
        %798 = vmatprep.subr.bf16.mxu0 0
        %799 = vmatpush1.bf16.msra.mxu0 0
        %800 = vmatprep.subr.bf16.mxu0 0
        %801 = vmatpush1.bf16.msra.mxu0 0
        %802 = vmatprep.mubr.bf16.mxu0 0
        %803 = vmatmul.mubr.bf16.gmra.mrb[0].mxu0 %v768
        %v804 = vpop.f32.mrb[0].mxu0
        %v805 = vadd.f32 %v753, %v804
        %v806 = vpop.f32.mrb[0].mxu0
        %v807 = vpop.f32.mrb[0].mxu0
        %v808 = vpop.f32.mrb[0].mxu0
        %809 = vdwg.mxu0
        %v810 = vpack.c.bf16 %v742, %v741
        %v811 = vld [vmem:[%s8] sm:$0xf]
        %v812 = vld [vmem:[%s8 + $0x4] sm:$0xf]
        %v813 = vld [vmem:[%s8 + $0x8] sm:$0xf]
        %v814 = vld [vmem:[%s8 + $0xc] sm:$0xf]
        %v815 = vld [vmem:[#allocation8] sm:$0x1]
        %v817 = vlaneseq
        %v818 = vshrl.u32 %v817, 7
        %v819 = vsub.s32 0, %v818
        %v820 = vrot.slane %v815, %v819
        %v826 = vunpack.c.l.b16 %v811
        %v827 = vunpack.c.l.b16 %v812
        %v828 = vunpack.c.l.b16 %v813
        %v829 = vunpack.c.l.b16 %v814
        %v830 = vpack.c.b16 %v827, %v826
        %v831 = vpack.c.b16 %v829, %v828
        %v835 = vsel %vm684, %v810, 0
        %837 = vmatprep.subr.bf16.mxu0 0
        %838 = vmatpush1.bf16.msra.mxu0 %v830
        %839 = vmatprep.subr.bf16.mxu0 0
        %840 = vmatpush1.bf16.msra.mxu0 %v831
        %841 = vmatprep.subr.bf16.mxu0 0
        %842 = vmatpush1.bf16.msra.mxu0 0
        %843 = vmatprep.subr.bf16.mxu0 0
        %844 = vmatpush1.bf16.msra.mxu0 0
        %845 = vmatprep.subr.bf16.mxu0 0
        %846 = vmatpush1.bf16.msra.mxu0 0
        %847 = vmatprep.subr.bf16.mxu0 0
        %848 = vmatpush1.bf16.msra.mxu0 0
        %849 = vmatprep.subr.bf16.mxu0 0
        %850 = vmatpush1.bf16.msra.mxu0 0
        %851 = vmatprep.subr.bf16.mxu0 0
        %852 = vmatpush1.bf16.msra.mxu0 0
        %853 = vmatprep.subr.bf16.mxu0 0
        %854 = vmatpush1.bf16.msra.mxu0 0
        %855 = vmatprep.subr.bf16.mxu0 0
        %856 = vmatpush1.bf16.msra.mxu0 0
        %857 = vmatprep.subr.bf16.mxu0 0
        %858 = vmatpush1.bf16.msra.mxu0 0
        %859 = vmatprep.subr.bf16.mxu0 0
        %860 = vmatpush1.bf16.msra.mxu0 0
        %861 = vmatprep.subr.bf16.mxu0 0
        %862 = vmatpush1.bf16.msra.mxu0 0
        %863 = vmatprep.subr.bf16.mxu0 0
        %864 = vmatpush1.bf16.msra.mxu0 0
        %865 = vmatprep.subr.bf16.mxu0 0
        %866 = vmatpush1.bf16.msra.mxu0 0
        %867 = vmatprep.subr.bf16.mxu0 0
        %868 = vmatpush1.bf16.msra.mxu0 0
        %869 = vmatprep.mubr.bf16.mxu0 0
        %870 = vmatmul.mubr.bf16.gmra.mrb[0].mxu0 %v835
        %v871 = vpop.f32.mrb[0].mxu0
        %v872 = vadd.f32 %v820, %v871
        %v873 = vpop.f32.mrb[0].mxu0
        %v874 = vpop.f32.mrb[0].mxu0
        %v875 = vadd.f32 %v820, %v874
        %v876 = vpop.f32.mrb[0].mxu0
        %877 = vdwg.mxu0
        %v878 = vld [vmem:[%s10] sm:$0xf]
        %v879 = vld [vmem:[%s10 + $0x4] sm:$0xf]
        %v880 = vld [vmem:[%s10 + $0x8] sm:$0xf]
        %v881 = vld [vmem:[%s10 + $0xc] sm:$0xf]
        %v882 = vld [vmem:[#allocation10] sm:$0x1]
        %v884 = vlaneseq
        %v885 = vshrl.u32 %v884, 7
        %v886 = vsub.s32 0, %v885
        %v887 = vrot.slane %v882, %v886
        %v893 = vunpack.c.l.b16 %v878
        %v894 = vunpack.c.l.b16 %v879
        %v895 = vunpack.c.l.b16 %v880
        %v896 = vunpack.c.l.b16 %v881
        %v897 = vpack.c.b16 %v894, %v893
        %v898 = vpack.c.b16 %v896, %v895
        %901 = vmatprep.subr.bf16.mxu0 0
        %902 = vmatpush1.bf16.msra.mxu0 %v897
        %903 = vmatprep.subr.bf16.mxu0 0
        %904 = vmatpush1.bf16.msra.mxu0 %v898
        %905 = vmatprep.subr.bf16.mxu0 0
        %906 = vmatpush1.bf16.msra.mxu0 0
        %907 = vmatprep.subr.bf16.mxu0 0
        %908 = vmatpush1.bf16.msra.mxu0 0
        %909 = vmatprep.subr.bf16.mxu0 0
        %910 = vmatpush1.bf16.msra.mxu0 0
        %911 = vmatprep.subr.bf16.mxu0 0
        %912 = vmatpush1.bf16.msra.mxu0 0
        %913 = vmatprep.subr.bf16.mxu0 0
        %914 = vmatpush1.bf16.msra.mxu0 0
        %915 = vmatprep.subr.bf16.mxu0 0
        %916 = vmatpush1.bf16.msra.mxu0 0
        %917 = vmatprep.subr.bf16.mxu0 0
        %918 = vmatpush1.bf16.msra.mxu0 0
        %919 = vmatprep.subr.bf16.mxu0 0
        %920 = vmatpush1.bf16.msra.mxu0 0
        %921 = vmatprep.subr.bf16.mxu0 0
        %922 = vmatpush1.bf16.msra.mxu0 0
        %923 = vmatprep.subr.bf16.mxu0 0
        %924 = vmatpush1.bf16.msra.mxu0 0
        %925 = vmatprep.subr.bf16.mxu0 0
        %926 = vmatpush1.bf16.msra.mxu0 0
        %927 = vmatprep.subr.bf16.mxu0 0
        %928 = vmatpush1.bf16.msra.mxu0 0
        %929 = vmatprep.subr.bf16.mxu0 0
        %930 = vmatpush1.bf16.msra.mxu0 0
        %931 = vmatprep.subr.bf16.mxu0 0
        %932 = vmatpush1.bf16.msra.mxu0 0
        %933 = vmatprep.mubr.bf16.mxu0 0
        %934 = vmatmul.mubr.bf16.gmra.mrb[0].mxu0 %v835
        %v935 = vpop.f32.mrb[0].mxu0
        %v936 = vadd.f32 %v887, %v935
        %v937 = vpop.f32.mrb[0].mxu0
        %v938 = vpop.f32.mrb[0].mxu0
        %v939 = vadd.f32 %v887, %v938
        %v940 = vpop.f32.mrb[0].mxu0
        %941 = vdwg.mxu0
        %v942 = vld [vmem:[#allocation2] sm:$0xf]
        %v945 = vunpack.c.l.s4 1966171168
        %v946 = vunpack.c.0.s8 %v945
        %v947 = vlaneseq
        %v948 = vshrl.u32 %v947, 7
        %v949 = vsub.s32 %v946, %v948
        %v950 = vrot.slane %v942, %v949
        %v951 = vcombine.high %v950, %v950
        %v953 = vunpack.c.l.s4 1966171168
        %v954 = vunpack.c.0.s8 %v953
        %v955 = vlaneseq
        %v956 = vshrl.u32 %v955, 7
        %v957 = vsub.s32 %v954, %v956
        %v958 = vrot.slane %v950, %v957
        %v960 = vunpack.c.l.s4 1966171168
        %v961 = vunpack.c.0.s8 %v960
        %v962 = vlaneseq
        %v963 = vshrl.u32 %v962, 7
        %v964 = vsub.s32 %v961, %v963
        %v965 = vrot.slane %v951, %v964
        %v966 = vcombine.high %v958, %v958
        %v967 = vcombine.high %v965, %v965
        %v968 = vlaneseq
        %v969 = vshrl.u32 %v968, 7
        %v970 = vsub.s32 0, %v969
        %v971 = vrot.slane %v958, %v970
        %v972 = vlaneseq
        %v973 = vshrl.u32 %v972, 7
        %v974 = vsub.s32 0, %v973
        %v975 = vrot.slane %v965, %v974
        %v976 = vlaneseq
        %v977 = vshrl.u32 %v976, 7
        %v978 = vsub.s32 0, %v977
        %v979 = vrot.slane %v966, %v978
        %v980 = vlaneseq
        %v981 = vshrl.u32 %v980, 7
        %v982 = vsub.s32 0, %v981
        %v983 = vrot.slane %v967, %v982
        %v988 = vmul.f32 %v805, %v971
        %v989 = vmul.f32 %v805, %v975
        %v990 = vmul.f32 %v805, %v979
        %v991 = vmul.f32 %v805, %v983
        %v992 = vpack.c.bf16 %v989, %v988
        %v993 = vpack.c.bf16 %v991, %v990
        %v994 = vpack.c.bf16 %v875, %v872
        %v996 = vsel %vm684, %v992, 0
        %v999 = vsel %vm684, %v993, 0
        %v1002 = vsel %vm684, %v994, 0
        %1004 = vmatprep.subr.bf16.mxu0 0
        %1005 = vmatpush1.bf16.xpose.msra.mxu0 %v1002
        %1006 = vmatprep.subr.bf16.mxu0 0
        %1007 = vmatpush1.bf16.xpose.msra.mxu0 0
        %1008 = vmatprep.subr.bf16.mxu0 0
        %1009 = vmatpush1.bf16.xpose.msra.mxu0 0
        %1010 = vmatprep.subr.bf16.mxu0 0
        %1011 = vmatpush1.bf16.xpose.msra.mxu0 0
        %1012 = vmatprep.subr.bf16.mxu0 0
        %1013 = vmatpush1.bf16.xpose.msra.mxu0 0
        %1014 = vmatprep.subr.bf16.mxu0 0
        %1015 = vmatpush1.bf16.xpose.msra.mxu0 0
        %1016 = vmatprep.subr.bf16.mxu0 0
        %1017 = vmatpush1.bf16.xpose.msra.mxu0 0
        %1018 = vmatprep.subr.bf16.mxu0 0
        %1019 = vmatpush1.bf16.xpose.msra.mxu0 0
        %1020 = vmatprep.subr.bf16.mxu0 0
        %1021 = vmatpush1.bf16.xpose.msra.mxu0 0
        %1022 = vmatprep.subr.bf16.mxu0 0
        %1023 = vmatpush1.bf16.xpose.msra.mxu0 0
        %1024 = vmatprep.subr.bf16.mxu0 0
        %1025 = vmatpush1.bf16.xpose.msra.mxu0 0
        %1026 = vmatprep.subr.bf16.mxu0 0
        %1027 = vmatpush1.bf16.xpose.msra.mxu0 0
        %1028 = vmatprep.subr.bf16.mxu0 0
        %1029 = vmatpush1.bf16.xpose.msra.mxu0 0
        %1030 = vmatprep.subr.bf16.mxu0 0
        %1031 = vmatpush1.bf16.xpose.msra.mxu0 0
        %1032 = vmatprep.subr.bf16.mxu0 0
        %1033 = vmatpush1.bf16.xpose.msra.mxu0 0
        %1034 = vmatprep.subr.bf16.mxu0 0
        %1035 = vmatpush1.bf16.xpose.msra.mxu0 0
        %1036 = vmatprep.mubr.bf16.mxu0 0
        %1037 = vmatmul.mubr.bf16.gmra.mrb[0].mxu0 %v996
        %v1038 = vpop.f32.mrb[0].mxu0
        %v1039 = vadd.f32 0.0, %v1038
        %v1040 = vpop.f32.mrb[0].mxu0
        %v1041 = vpop.f32.mrb[0].mxu0
        %v1042 = vadd.f32 0.0, %v1041
        %v1043 = vpop.f32.mrb[0].mxu0
        %1044 = vmatprep.mubr.bf16.mxu0 0
        %1045 = vmatmul.mubr.bf16.gmra.mrb[0].mxu0 %v999
        %v1046 = vpop.f32.mrb[0].mxu0
        %v1047 = vadd.f32 0.0, %v1046
        %v1048 = vpop.f32.mrb[0].mxu0
        %v1049 = vpop.f32.mrb[0].mxu0
        %v1050 = vadd.f32 0.0, %v1049
        %v1051 = vpop.f32.mrb[0].mxu0
        %1052 = vdwg.mxu0
        %v1053 = vld [vmem:[%s677] sm:$0xff]
        %v1054 = vadd.f32 %v1039, %v1053
        %v1055 = vadd.f32 %v1042, %v1053
        %v1056 = vadd.f32 %v1047, %v1053
        %v1057 = vadd.f32 %v1050, %v1053
        %vm1058 = vcmask 130048
        %v1059 = vsel %vm1058, %v1054, -inf
        %1060 = vmax.xlane.f32.xlu0 %v1059
        %v1061 = vpop.xlane.xlu0 %1060
        %v1062 = vsel %vm1058, %v1055, -inf
        %1063 = vmax.xlane.f32.xlu0 %v1062
        %v1064 = vpop.xlane.xlu0 %1063
        %v1065 = vsel %vm1058, %v1056, -inf
        %1066 = vmax.xlane.f32.xlu0 %v1065
        %v1067 = vpop.xlane.xlu0 %1066
        %v1068 = vsel %vm1058, %v1057, -inf
        %1069 = vmax.xlane.f32.xlu0 %v1068
        %v1070 = vpop.xlane.xlu0 %1069
        %v1071 = vsub.f32 %v1054, %v1061
        %v1072 = vsub.f32 %v1055, %v1064
        %v1073 = vsub.f32 %v1056, %v1067
        %v1074 = vsub.f32 %v1057, %v1070
        %v1075 = vmul.f32 %v1071, 1.442695
        %v1076 = vpow.pop %v1075
        %v1077 = vmul.f32 %v1072, 1.442695
        %v1078 = vpow.pop %v1077
        %v1079 = vmul.f32 %v1073, 1.442695
        %v1080 = vpow.pop %v1079
        %v1081 = vmul.f32 %v1074, 1.442695
        %v1082 = vpow.pop %v1081
        %v1083 = vsel %vm1058, %v1076, 0.0
        %1084 = vadd.xlane.f32.xlu0 %v1083
        %v1085 = vpop.xlane.xlu0 %1084
        %v1086 = vsel %vm1058, %v1078, 0.0
        %1087 = vadd.xlane.f32.xlu0 %v1086
        %v1088 = vpop.xlane.xlu0 %1087
        %v1089 = vsel %vm1058, %v1080, 0.0
        %1090 = vadd.xlane.f32.xlu0 %v1089
        %v1091 = vpop.xlane.xlu0 %1090
        %v1092 = vsel %vm1058, %v1082, 0.0
        %1093 = vadd.xlane.f32.xlu0 %v1092
        %v1094 = vpop.xlane.xlu0 %1093
        %v1095 = vpack.c.bf16 %v1078, %v1076
        %v1096 = vpack.c.bf16 %v1082, %v1080
        %v1097 = vpack.c.bf16 %v939, %v936
        %v1099 = vsel %vm1058, %v1095, 0
        %v1102 = vsel %vm1058, %v1096, 0
        %1104 = vmatprep.subr.bf16.mxu0 0
        %1105 = vmatpush1.bf16.msra.mxu0 %v1097
        %1106 = vmatprep.subr.bf16.mxu0 0
        %1107 = vmatpush1.bf16.msra.mxu0 0
        %1108 = vmatprep.subr.bf16.mxu0 0
        %1109 = vmatpush1.bf16.msra.mxu0 0
        %1110 = vmatprep.subr.bf16.mxu0 0
        %1111 = vmatpush1.bf16.msra.mxu0 0
        %1112 = vmatprep.subr.bf16.mxu0 0
        %1113 = vmatpush1.bf16.msra.mxu0 0
        %1114 = vmatprep.subr.bf16.mxu0 0
        %1115 = vmatpush1.bf16.msra.mxu0 0
        %1116 = vmatprep.subr.bf16.mxu0 0
        %1117 = vmatpush1.bf16.msra.mxu0 0
        %1118 = vmatprep.subr.bf16.mxu0 0
        %1119 = vmatpush1.bf16.msra.mxu0 0
        %1120 = vmatprep.subr.bf16.mxu0 0
        %1121 = vmatpush1.bf16.msra.mxu0 0
        %1122 = vmatprep.subr.bf16.mxu0 0
        %1123 = vmatpush1.bf16.msra.mxu0 0
        %1124 = vmatprep.subr.bf16.mxu0 0
        %1125 = vmatpush1.bf16.msra.mxu0 0
        %1126 = vmatprep.subr.bf16.mxu0 0
        %1127 = vmatpush1.bf16.msra.mxu0 0
        %1128 = vmatprep.subr.bf16.mxu0 0
        %1129 = vmatpush1.bf16.msra.mxu0 0
        %1130 = vmatprep.subr.bf16.mxu0 0
        %1131 = vmatpush1.bf16.msra.mxu0 0
        %1132 = vmatprep.subr.bf16.mxu0 0
        %1133 = vmatpush1.bf16.msra.mxu0 0
        %1134 = vmatprep.subr.bf16.mxu0 0
        %1135 = vmatpush1.bf16.msra.mxu0 0
        %1136 = vmatprep.mubr.bf16.mxu0 0
        %1137 = vmatmul.mubr.bf16.gmra.mrb[0].mxu0 %v1099
        %v1138 = vpop.f32.mrb[0].mxu0
        %v1139 = vadd.f32 0.0, %v1138
        %v1140 = vpop.f32.mrb[0].mxu0
        %v1141 = vpop.f32.mrb[0].mxu0
        %v1142 = vadd.f32 0.0, %v1141
        %v1143 = vpop.f32.mrb[0].mxu0
        %1144 = vmatprep.mubr.bf16.mxu0 0
        %1145 = vmatmul.mubr.bf16.gmra.mrb[0].mxu0 %v1102
        %v1146 = vpop.f32.mrb[0].mxu0
        %v1147 = vadd.f32 0.0, %v1146
        %v1148 = vpop.f32.mrb[0].mxu0
        %v1149 = vpop.f32.mrb[0].mxu0
        %v1150 = vadd.f32 0.0, %v1149
        %v1151 = vpop.f32.mrb[0].mxu0
        %1152 = vdwg.mxu0
        %v1153 = vrcp.pop %v1085
        %v1154 = vrcp.pop %v1088
        %v1155 = vrcp.pop %v1091
        %v1156 = vrcp.pop %v1094
        %v1157 = vmul.f32 %v1139, %v1153
        %v1158 = vmul.f32 %v1142, %v1154
        %v1159 = vmul.f32 %v1147, %v1155
        %v1160 = vmul.f32 %v1150, %v1156
        %v1161 = vmul.f32 %v1157, %v971
        %v1162 = vmul.f32 %v1158, %v975
        %v1163 = vmul.f32 %v1159, %v979
        %v1164 = vmul.f32 %v1160, %v983
        %v1165 = vsel %vm684, %v1161, 0.0
        %v1166 = vsel %vm684, %v1162, 0.0
        %v1167 = vadd.f32 %v1165, %v1166
        %v1168 = vsel %vm684, %v1163, 0.0
        %v1169 = vadd.f32 %v1167, %v1168
        %v1170 = vsel %vm684, %v1164, 0.0
        %v1171 = vadd.f32 %v1169, %v1170
        %v1172 = vpack.c.bf16 %v1171, %v1171
        %v1173 = vld [vmem:[#allocation11] sm:$0xf]
        %v1174 = vld [vmem:[#allocation11 + $0x4] sm:$0xf]
        %v1175 = vld [vmem:[#allocation11 + $0x8] sm:$0xf]
        %v1176 = vld [vmem:[#allocation11 + $0xc] sm:$0xf]
        %v1177 = vld [vmem:[#allocation13] sm:$0x1]
        %v1179 = vlaneseq
        %v1180 = vshrl.u32 %v1179, 7
        %v1181 = vsub.s32 0, %v1180
        %v1182 = vrot.slane %v1177, %v1181
        %v1188 = vunpack.c.l.b16 %v1173
        %v1189 = vunpack.c.l.b16 %v1174
        %v1190 = vunpack.c.l.b16 %v1175
        %v1191 = vunpack.c.l.b16 %v1176
        %v1192 = vpack.c.b16 %v1189, %v1188
        %v1193 = vpack.c.b16 %v1191, %v1190
        %v1197 = vsel %vm684, %v1172, 0
        %1199 = vmatprep.subr.bf16.mxu0 0
        %1200 = vmatpush1.bf16.msra.mxu0 %v1192
        %1201 = vmatprep.subr.bf16.mxu0 0
        %1202 = vmatpush1.bf16.msra.mxu0 %v1193
        %1203 = vmatprep.subr.bf16.mxu0 0
        %1204 = vmatpush1.bf16.msra.mxu0 0
        %1205 = vmatprep.subr.bf16.mxu0 0
        %1206 = vmatpush1.bf16.msra.mxu0 0
        %1207 = vmatprep.subr.bf16.mxu0 0
        %1208 = vmatpush1.bf16.msra.mxu0 0
        %1209 = vmatprep.subr.bf16.mxu0 0
        %1210 = vmatpush1.bf16.msra.mxu0 0
        %1211 = vmatprep.subr.bf16.mxu0 0
        %1212 = vmatpush1.bf16.msra.mxu0 0
        %1213 = vmatprep.subr.bf16.mxu0 0
        %1214 = vmatpush1.bf16.msra.mxu0 0
        %1215 = vmatprep.subr.bf16.mxu0 0
        %1216 = vmatpush1.bf16.msra.mxu0 0
        %1217 = vmatprep.subr.bf16.mxu0 0
        %1218 = vmatpush1.bf16.msra.mxu0 0
        %1219 = vmatprep.subr.bf16.mxu0 0
        %1220 = vmatpush1.bf16.msra.mxu0 0
        %1221 = vmatprep.subr.bf16.mxu0 0
        %1222 = vmatpush1.bf16.msra.mxu0 0
        %1223 = vmatprep.subr.bf16.mxu0 0
        %1224 = vmatpush1.bf16.msra.mxu0 0
        %1225 = vmatprep.subr.bf16.mxu0 0
        %1226 = vmatpush1.bf16.msra.mxu0 0
        %1227 = vmatprep.subr.bf16.mxu0 0
        %1228 = vmatpush1.bf16.msra.mxu0 0
        %1229 = vmatprep.subr.bf16.mxu0 0
        %1230 = vmatpush1.bf16.msra.mxu0 0
        %1231 = vmatprep.mubr.bf16.mxu0 0
        %1232 = vmatmul.mubr.bf16.gmra.mrb[0].mxu0 %v1197
        %v1233 = vpop.f32.mrb[0].mxu0
        %v1234 = vadd.f32 %v1182, %v1233
        %v1235 = vpop.f32.mrb[0].mxu0
        %v1236 = vpop.f32.mrb[0].mxu0
        %v1237 = vpop.f32.mrb[0].mxu0
        %1238 = vdwg.mxu0
        %v1239 = vadd.f32 %v679, %v1234
        %v1240 = vsel %vm684, %v1239, 0.0
        %1241 = vadd.xlane.f32.xlu0 %v1240
        %v1242 = vpop.xlane.xlu0 %1241
        %v1243 = vmul.f32 %v1242, %v688
        %v1244 = vsub.f32 %v1239, %v1243
        %v1245 = vmul.f32 %v1244, %v1244
        %v1246 = vsel %vm684, %v1245, 0.0
        %1247 = vadd.xlane.f32.xlu0 %v1246
        %v1248 = vpop.xlane.xlu0 %1247
        %v1249 = vmul.f32 %v1248, %v688
        %v1250 = vadd.f32 %v1249, 1e-05
        %v1251 = vrsqrt.pop %v1250
        %v1252 = vmul.f32 %v1244, %v1251
        %v1253 = vmul.f32 %v1252, %v703
        %v1254 = vadd.f32 %v1253, %v710
        %v1255 = vpack.c.bf16 %v1254, %v1254
        %v1256 = vld [vmem:[%s14] sm:$0xf]
        %v1257 = vld [vmem:[%s14 + $0x4] sm:$0xf]
        %v1258 = vld [vmem:[%s14 + $0x8] sm:$0xf]
        %v1259 = vld [vmem:[%s14 + $0xc] sm:$0xf]
        %v1260 = vld [vmem:[%s15] sm:$0x1]
        %v1262 = vlaneseq
        %v1263 = vshrl.u32 %v1262, 7
        %v1264 = vsub.s32 0, %v1263
        %v1265 = vrot.slane %v1260, %v1264
        %v1271 = vunpack.c.l.b16 %v1256
        %v1272 = vunpack.c.l.b16 %v1257
        %v1273 = vunpack.c.l.b16 %v1258
        %v1274 = vunpack.c.l.b16 %v1259
        %v1275 = vpack.c.b16 %v1272, %v1271
        %v1276 = vpack.c.b16 %v1274, %v1273
        %v1280 = vsel %vm684, %v1255, 0
        %1282 = vmatprep.subr.bf16.mxu0 0
        %1283 = vmatpush1.bf16.msra.mxu0 %v1275
        %1284 = vmatprep.subr.bf16.mxu0 0
        %1285 = vmatpush1.bf16.msra.mxu0 %v1276
        %1286 = vmatprep.subr.bf16.mxu0 0
        %1287 = vmatpush1.bf16.msra.mxu0 0
        %1288 = vmatprep.subr.bf16.mxu0 0
        %1289 = vmatpush1.bf16.msra.mxu0 0
        %1290 = vmatprep.subr.bf16.mxu0 0
        %1291 = vmatpush1.bf16.msra.mxu0 0
        %1292 = vmatprep.subr.bf16.mxu0 0
        %1293 = vmatpush1.bf16.msra.mxu0 0
        %1294 = vmatprep.subr.bf16.mxu0 0
        %1295 = vmatpush1.bf16.msra.mxu0 0
        %1296 = vmatprep.subr.bf16.mxu0 0
        %1297 = vmatpush1.bf16.msra.mxu0 0
        %1298 = vmatprep.subr.bf16.mxu0 0
        %1299 = vmatpush1.bf16.msra.mxu0 0
        %1300 = vmatprep.subr.bf16.mxu0 0
        %1301 = vmatpush1.bf16.msra.mxu0 0
        %1302 = vmatprep.subr.bf16.mxu0 0
        %1303 = vmatpush1.bf16.msra.mxu0 0
        %1304 = vmatprep.subr.bf16.mxu0 0
        %1305 = vmatpush1.bf16.msra.mxu0 0
        %1306 = vmatprep.subr.bf16.mxu0 0
        %1307 = vmatpush1.bf16.msra.mxu0 0
        %1308 = vmatprep.subr.bf16.mxu0 0
        %1309 = vmatpush1.bf16.msra.mxu0 0
        %1310 = vmatprep.subr.bf16.mxu0 0
        %1311 = vmatpush1.bf16.msra.mxu0 0
        %1312 = vmatprep.subr.bf16.mxu0 0
        %1313 = vmatpush1.bf16.msra.mxu0 0
        %1314 = vmatprep.mubr.bf16.mxu0 0
        %1315 = vmatmul.mubr.bf16.gmra.mrb[0].mxu0 %v1280
        %v1316 = vpop.f32.mrb[0].mxu0
        %v1317 = vadd.f32 %v1265, %v1316
        %v1318 = vpop.f32.mrb[0].mxu0
        %v1319 = vpop.f32.mrb[0].mxu0
        %v1320 = vpop.f32.mrb[0].mxu0
        %1321 = vdwg.mxu0
        %v1322 = vmax.f32 %v1317, 0.0
        %v1323 = vpack.c.bf16 %v1322, %v1322
        %v1324 = vld [vmem:[%s16] sm:$0xf]
        %v1325 = vld [vmem:[%s16 + $0x4] sm:$0xf]
        %v1326 = vld [vmem:[%s16 + $0x8] sm:$0xf]
        %v1327 = vld [vmem:[%s16 + $0xc] sm:$0xf]
        %v1328 = vld [vmem:[%s16 + $0x10] sm:$0xf]
        %v1329 = vld [vmem:[%s16 + $0x14] sm:$0xf]
        %v1330 = vld [vmem:[%s16 + $0x18] sm:$0xf]
        %v1331 = vld [vmem:[%s16 + $0x1c] sm:$0xf]
        %v1332 = vld [vmem:[%s16 + $0x20] sm:$0xf]
        %v1333 = vld [vmem:[%s16 + $0x24] sm:$0xf]
        %v1334 = vld [vmem:[%s16 + $0x28] sm:$0xf]
        %v1335 = vld [vmem:[%s16 + $0x2c] sm:$0xf]
        %v1336 = vld [vmem:[%s16 + $0x30] sm:$0xf]
        %v1337 = vld [vmem:[%s16 + $0x34] sm:$0xf]
        %v1338 = vld [vmem:[%s16 + $0x38] sm:$0xf]
        %v1339 = vld [vmem:[%s16 + $0x3c] sm:$0xf]
        %v1340 = vld [vmem:[%s17] sm:$0x1]
        %v1342 = vlaneseq
        %v1343 = vshrl.u32 %v1342, 7
        %v1344 = vsub.s32 0, %v1343
        %v1345 = vrot.slane %v1340, %v1344
        %v1363 = vunpack.c.l.b16 %v1324
        %v1364 = vunpack.c.l.b16 %v1325
        %v1365 = vunpack.c.l.b16 %v1326
        %v1366 = vunpack.c.l.b16 %v1327
        %v1367 = vunpack.c.l.b16 %v1328
        %v1368 = vunpack.c.l.b16 %v1329
        %v1369 = vunpack.c.l.b16 %v1330
        %v1370 = vunpack.c.l.b16 %v1331
        %v1371 = vunpack.c.l.b16 %v1332
        %v1372 = vunpack.c.l.b16 %v1333
        %v1373 = vunpack.c.l.b16 %v1334
        %v1374 = vunpack.c.l.b16 %v1335
        %v1375 = vunpack.c.l.b16 %v1336
        %v1376 = vunpack.c.l.b16 %v1337
        %v1377 = vunpack.c.l.b16 %v1338
        %v1378 = vunpack.c.l.b16 %v1339
        %v1379 = vpack.c.b16 %v1364, %v1363
        %v1380 = vpack.c.b16 %v1366, %v1365
        %v1381 = vpack.c.b16 %v1368, %v1367
        %v1382 = vpack.c.b16 %v1370, %v1369
        %v1383 = vpack.c.b16 %v1372, %v1371
        %v1384 = vpack.c.b16 %v1374, %v1373
        %v1385 = vpack.c.b16 %v1376, %v1375
        %v1386 = vpack.c.b16 %v1378, %v1377
        %1395 = vmatprep.subr.bf16.mxu0 0
        %1396 = vmatpush1.bf16.msra.mxu0 %v1379
        %1397 = vmatprep.subr.bf16.mxu0 0
        %1398 = vmatpush1.bf16.msra.mxu0 %v1380
        %1399 = vmatprep.subr.bf16.mxu0 0
        %1400 = vmatpush1.bf16.msra.mxu0 %v1381
        %1401 = vmatprep.subr.bf16.mxu0 0
        %1402 = vmatpush1.bf16.msra.mxu0 %v1382
        %1403 = vmatprep.subr.bf16.mxu0 0
        %1404 = vmatpush1.bf16.msra.mxu0 %v1383
        %1405 = vmatprep.subr.bf16.mxu0 0
        %1406 = vmatpush1.bf16.msra.mxu0 %v1384
        %1407 = vmatprep.subr.bf16.mxu0 0
        %1408 = vmatpush1.bf16.msra.mxu0 %v1385
        %1409 = vmatprep.subr.bf16.mxu0 0
        %1410 = vmatpush1.bf16.msra.mxu0 %v1386
        %1411 = vmatprep.subr.bf16.mxu0 0
        %1412 = vmatpush1.bf16.msra.mxu0 0
        %1413 = vmatprep.subr.bf16.mxu0 0
        %1414 = vmatpush1.bf16.msra.mxu0 0
        %1415 = vmatprep.subr.bf16.mxu0 0
        %1416 = vmatpush1.bf16.msra.mxu0 0
        %1417 = vmatprep.subr.bf16.mxu0 0
        %1418 = vmatpush1.bf16.msra.mxu0 0
        %1419 = vmatprep.subr.bf16.mxu0 0
        %1420 = vmatpush1.bf16.msra.mxu0 0
        %1421 = vmatprep.subr.bf16.mxu0 0
        %1422 = vmatpush1.bf16.msra.mxu0 0
        %1423 = vmatprep.subr.bf16.mxu0 0
        %1424 = vmatpush1.bf16.msra.mxu0 0
        %1425 = vmatprep.subr.bf16.mxu0 0
        %1426 = vmatpush1.bf16.msra.mxu0 0
        %1427 = vmatprep.mubr.bf16.mxu0 0
        %1428 = vmatmul.mubr.bf16.gmra.mrb[0].mxu0 %v1323
        %v1429 = vpop.f32.mrb[0].mxu0
        %v1430 = vadd.f32 %v1345, %v1429
        %v1431 = vpop.f32.mrb[0].mxu0
        %v1432 = vpop.f32.mrb[0].mxu0
        %v1433 = vpop.f32.mrb[0].mxu0
        %1434 = vdwg.mxu0
        %v1435 = vmax.f32 %v1430, 0.0
        %v1436 = vadd.f32 %v1239, %v1435
        %1437 = vst.msk [vmem:[%s669] sm:$0xff] %vm684, %v1436
        %s1438 = sand.u32 %s432, 1
        %s1439 = scalar_lea.sflag [#allocation4], %s1438
        %s1440 = sand.u32 %s432, 1
        %s1441 = smul.addr %s1440, 8
        %s1442 = scalar_lea.vmem [#allocation14], %s1441
        // Predicated region
        $region121: #{tpu_custom_call.1} parent=91 // pred_check
          %p1443 = pneg %p442
        $region122: #{tpu_custom_call.1} parent=91 // pred_check_branch
          %1445 = sbr.rel (%p1443) target = $region124
        $region123: #{tpu_custom_call.1} parent=91 // pred_region
          %s1447 = ssub.s32 128, 128
          %1448 = vsyncadd %s1439, %s1447
          %s1449 = smul.addr %s36, 128
          %s1450 = scalar_lea.hbm %s18, %s1449
          %s1452 = sshll.u32 %s1442, 4
          %s1453 = int_to_ptr.vmem [resolvable:$true] %s1452
          %1455 = dma.vmem_to_hbm [thread:$0]  %s1453, 128, %s1450, %s1439
        $region124: #{tpu_custom_call.1} parent=91 // pred_fallthru
          _
      $region92: #{tpu_custom_call.1} parent=5 // pred_fallthru
        _
      %p1456 = scmp.le.s32.totalorder 2, %s31
      // Predicated region
      $region125: #{tpu_custom_call.1} parent=5 // pred_check
        %p1457 = pneg %p1456
      $region126: #{tpu_custom_call.1} parent=5 // pred_check_branch
        %1459 = sbr.rel (%p1457) target = $region128
      $region127: #{tpu_custom_call.1} parent=5 // pred_region
        %s1460 = ssub.s32 %s31, 2
        // Predicated region
        $region129: #{tpu_custom_call.1} parent=127 // pred_check
          %p1461 = pneg %p448
        $region130: #{tpu_custom_call.1} parent=127 // pred_check_branch
          %1463 = sbr.rel (%p1461) target = $region132
        $region131: #{tpu_custom_call.1} parent=127 // pred_region
          %s1464 = sand.u32 %s433, 1
          %s1465 = scalar_lea.sflag [#allocation4], %s1464
          %s1466 = sand.u32 %s433, 1
          %s1467 = smul.addr %s1466, 8
          %s1468 = scalar_lea.vmem [#allocation14], %s1467
          %1469 = dma.done %s1465, 128
        $region132: #{tpu_custom_call.1} parent=127 // pred_fallthru
          _
      $region128: #{tpu_custom_call.1} parent=5 // pred_fallthru
        _
    $region6: #{tpu_custom_call.1} parent=1 // loop_footer
      %s35 = sadd.s32 1, %s31
    $region7: #{tpu_custom_call.1} parent=1 // loop_footer_branch
      %30 = sbr.rel target = $region3
    $region8: #{tpu_custom_call.1} parent=1 // loop_exit
      _
    %1470 = vsyncpa [#allocation3], 1
    %s1471 = scalar_lea.sflag [#allocation3], 1
    %1472 = vsyncpa %s1471, 1
    %1473 = vsyncpa [#allocation6], 1
    %1474 = vsyncpa [#allocation9], 1
    %1475 = vsyncpa [#allocation12], 1
    %1476 = vsyncpa [#allocation4], 1
    %s1477 = scalar_lea.sflag [#allocation4], 1
    %1478 = vsyncpa %s1477, 1

</llo_original>
